<compile_context>
chip_gen: v7x
topology: tpu7x:2x2x1
jax: 0.10.0
libtpu: 0.0.40
codegen_flags: <defaults>
</compile_context>

<pallas_src>
import functools
import math

import jax
import jax.numpy as jnp
from jax import lax
from jax.experimental import pallas as pl
from jax.experimental.pallas import tpu as pltpu


def _layer_norm_f32(x, gamma, beta, eps=1e-12):
    # BertLayerNorm: gamma * (x - mean) / sqrt(var + eps) + beta, eps=1e-12 (f32 stats).
    mu = jnp.mean(x, axis=-1, keepdims=True)
    xc = x - mu
    var = jnp.mean(xc * xc, axis=-1, keepdims=True)
    return gamma * (xc * lax.rsqrt(var + eps)) + beta


def bert_layer_kernel(x_ref, mask_ref,
                      wq_ref, bq_ref, wkv_ref, bkv_ref,
                      wo_ref, bo_ref, g1_ref, beta1_ref,
                      wi_ref, bi_ref, wout_ref, bout_ref,
                      g2_ref, beta2_ref,
                      out_ref,
                      kv_ref,
                      *, num_heads, q_tile, ffn_chunk):
    _, S, H = x_ref.shape
    TQ = q_tile
    NH = num_heads
    dh = H // NH
    isz = wi_ref.shape[1]
    w_dtype = wq_ref.dtype
    scale = 1.0 / math.sqrt(dh)
    inv_sqrt2 = 1.0 / math.sqrt(2.0)

    qi = pl.program_id(1)

    # --- K/V projection for the FULL sequence: one fused (H, 2H) matmul, computed only
    #     on the first query tile of each batch row and carried in VMEM scratch. ---
    @pl.when(qi == 0)
    def _compute_kv():
        x_full = x_ref[0].astype(w_dtype)                      # (S, H)
        kv = jnp.dot(x_full, wkv_ref[...],
                     preferred_element_type=jnp.float32) + bkv_ref[...]
        kv_ref[...] = kv.astype(kv_ref.dtype)                  # (S, 2H)

    # --- Query tile of the embeddings (Q projection input + residual). ---
    row0 = pl.multiple_of(qi * TQ, TQ)
    x_q_f32 = x_ref[0, pl.ds(row0, TQ), :].astype(jnp.float32)  # (TQ, H)
    x_q = x_q_f32.astype(w_dtype)

    add_mask = (1.0 - mask_ref[0]) * (-10000.0)                 # (1, S) additive key mask

    # --- BertSelfAttention ---
    q = jnp.dot(x_q, wq_ref[...], preferred_element_type=jnp.float32) + bq_ref[...]

    # Per-head attention (static unroll). No transpose of K (NT dot_general) and no
    # concatenate: each head's context goes straight through its Wo row-slice and is
    # accumulated into the self-output projection.
    nt_dims = (((1,), (1,)), ((), ()))
    attn_lin = jnp.zeros((TQ, H), jnp.float32)
    for h in range(NH):
        qh = q[:, h * dh:(h + 1) * dh].astype(w_dtype)          # (TQ, dh)
        kh = kv_ref[:, h * dh:(h + 1) * dh]                     # (S, dh)
        vh = kv_ref[:, H + h * dh:H + (h + 1) * dh]             # (S, dh)

        s = lax.dot_general(qh, kh, nt_dims,
                            preferred_element_type=jnp.float32) * scale   # (TQ, S)
        s = s + add_mask
        s = s - jnp.max(s, axis=-1, keepdims=True)
        p = jnp.exp(s)
        p = p * pl.reciprocal(jnp.sum(p, axis=-1, keepdims=True), approx=True)

        ctx_h = jnp.dot(p.astype(w_dtype), vh,
                        preferred_element_type=jnp.float32)     # (TQ, dh)
        attn_lin = attn_lin + jnp.dot(
            ctx_h.astype(w_dtype), wo_ref[h * dh:(h + 1) * dh, :],
            preferred_element_type=jnp.float32)                 # (TQ, H)
    attn_lin = attn_lin + bo_ref[...]

    # --- BertSelfOutput: LayerNorm(dense(ctx) + embeddings) ---
    attn = _layer_norm_f32(attn_lin + x_q_f32, g1_ref[...], beta1_ref[...])

    # --- BertIntermediate + BertOutput, blocked over the intermediate dimension ---
    attn_c = attn.astype(w_dtype)
    ffn = jnp.zeros((TQ, H), jnp.float32)
    for c0 in range(0, isz, ffn_chunk):
        hc = jnp.dot(attn_c, wi_ref[:, c0:c0 + ffn_chunk],
                     preferred_element_type=jnp.float32) + bi_ref[:, c0:c0 + ffn_chunk]
        hc = 0.5 * hc * (1.0 + lax.erf(hc * inv_sqrt2))          # exact GELU
        ffn = ffn + jnp.dot(hc.astype(w_dtype), wout_ref[c0:c0 + ffn_chunk, :],
                            preferred_element_type=jnp.float32)
    ffn = ffn + bout_ref[...]

    out = _layer_norm_f32(ffn + attn, g2_ref[...], beta2_ref[...])
    out_ref[0] = out.astype(out_ref.dtype)


def bert_layer(emb, mask, params, num_heads, *, q_tile=None, ffn_chunk=None,
               param_dtype=None):
    B, S, H = emb.shape
    isz = params["Wi"].shape[1]
    assert H % num_heads == 0

    if q_tile is None:
        q_tile = 128 if (S > 128 and S % 128 == 0) else S
    assert S % q_tile == 0 and (q_tile % 8 == 0 or q_tile == S)

    if ffn_chunk is None:
        ffn_chunk = isz
        for c in (1024, 512, 256, 128):
            if isz % c == 0:
                ffn_chunk = c
                break
    assert isz % ffn_chunk == 0

    w_dtype = param_dtype if param_dtype is not None else emb.dtype
    f32 = jnp.float32

    wq = params["Wq"].astype(w_dtype)
    wkv = jnp.concatenate([params["Wk"], params["Wv"]], axis=1).astype(w_dtype)
    wo = params["Wo"].astype(w_dtype)
    wi = params["Wi"].astype(w_dtype)
    wout = params["Wout"].astype(w_dtype)
    bq = params["bq"].astype(f32)
    bkv = jnp.concatenate([params["bk"], params["bv"]], axis=1).astype(f32)
    bo = params["bo"].astype(f32)
    bi = params["bi"].astype(f32)
    bout = params["bout"].astype(f32)
    g1, beta1 = params["g1"].astype(f32), params["beta1"].astype(f32)
    g2, beta2 = params["g2"].astype(f32), params["beta2"].astype(f32)

    mask3 = mask.reshape(B, 1, S).astype(f32)

    def rep(shape):
        return pl.BlockSpec(shape, lambda b, qi: (0,) * len(shape))

    in_specs = [
        pl.BlockSpec((1, S, H), lambda b, qi: (b, 0, 0)),   # embeddings (full seq / row)
        pl.BlockSpec((1, 1, S), lambda b, qi: (b, 0, 0)),   # mask
        rep((H, H)), rep((1, H)),                           # Wq, bq
        rep((H, 2 * H)), rep((1, 2 * H)),                   # Wkv, bkv (fused K/V)
        rep((H, H)), rep((1, H)),                           # Wo, bo
        rep((1, H)), rep((1, H)),                           # gamma1, beta1
        rep((H, isz)), rep((1, isz)),                       # Wi, bi
        rep((isz, H)), rep((1, H)),                         # Wout, bout
        rep((1, H)), rep((1, H)),                           # gamma2, beta2
    ]
    out_spec = pl.BlockSpec((1, q_tile, H), lambda b, qi: (b, qi, 0))

    kernel = functools.partial(bert_layer_kernel, num_heads=num_heads,
                               q_tile=q_tile, ffn_chunk=ffn_chunk)
    return pl.pallas_call(
        kernel,
        out_shape=jax.ShapeDtypeStruct((B, S, H), emb.dtype),
        grid_spec=pltpu.PrefetchScalarGridSpec(
            num_scalar_prefetch=0,
            grid=(B, S // q_tile),
            in_specs=in_specs,
            out_specs=out_spec,
            scratch_shapes=[pltpu.VMEM((S, 2 * H), w_dtype)]),   # carried K/V
        compiler_params=pltpu.CompilerParams(
            dimension_semantics=("parallel", "arbitrary")),
    )(emb, mask3, wq, bq, wkv, bkv, wo, bo, g1, beta1,
      wi, bi, wout, bout, g2, beta2)


def bert_layer_ref(emb, mask, params, num_heads):
    """Pure-JAX f32 reference mirroring the PyTorch forward (for correctness check)."""
    B, S, H = emb.shape
    dh = H // num_heads
    add_mask = (1.0 - mask.astype(emb.dtype))[:, None, None, :] * (-10000.0)

    def lin(x, w, b):
        return jnp.einsum("bsh,hk->bsk", x, w) + b

    q = lin(emb, params["Wq"], params["bq"]).reshape(B, S, num_heads, dh).transpose(0, 2, 1, 3)
    k = lin(emb, params["Wk"], params["bk"]).reshape(B, S, num_heads, dh).transpose(0, 2, 1, 3)
    v = lin(emb, params["Wv"], params["bv"]).reshape(B, S, num_heads, dh).transpose(0, 2, 1, 3)
    scores = jnp.einsum("bhqd,bhkd->bhqk", q, k) / math.sqrt(dh) + add_mask
    p = jax.nn.softmax(scores, axis=-1)
    ctx = jnp.einsum("bhqk,bhkd->bhqd", p, v).transpose(0, 2, 1, 3).reshape(B, S, H)

    def ln(x, g, b, eps=1e-12):
        mu = x.mean(-1, keepdims=True)
        var = ((x - mu) ** 2).mean(-1, keepdims=True)
        return g * (x - mu) / jnp.sqrt(var + eps) + b

    attn = ln(lin(ctx, params["Wo"], params["bo"]) + emb, params["g1"], params["beta1"])
    inter = lin(attn, params["Wi"], params["bi"])
    inter = 0.5 * inter * (1.0 + lax.erf(inter / math.sqrt(2.0)))
    out = ln(lin(inter, params["Wout"], params["bout"]) + attn, params["g2"], params["beta2"])
    return out


def init_params(key, hidden, intermediate):
    ks = jax.random.split(key, 16)

    def w(k, shape, scale=0.02):
        return jax.random.normal(k, shape, jnp.float32) * scale

    return {
        "Wq": w(ks[0], (hidden, hidden)),
        "Wk": w(ks[1], (hidden, hidden)),
        "Wv": w(ks[2], (hidden, hidden)),
        "Wo": w(ks[3], (hidden, hidden)),
        "Wi": w(ks[4], (hidden, intermediate)),
        "Wout": w(ks[5], (intermediate, hidden)),
        "bq": w(ks[6], (1, hidden), 0.1),
        "bk": w(ks[7], (1, hidden), 0.1),
        "bv": w(ks[8], (1, hidden), 0.1),
        "bo": w(ks[9], (1, hidden), 0.1),
        "bi": w(ks[10], (1, intermediate), 0.1),
        "bout": w(ks[11], (1, hidden), 0.1),
        "g1": 1.0 + w(ks[12], (1, hidden), 0.1),
        "beta1": w(ks[13], (1, hidden), 0.1),
        "g2": 1.0 + w(ks[14], (1, hidden), 0.1),
        "beta2": w(ks[15], (1, hidden), 0.1),
    }


if __name__ == "__main__":
    # Small BERT-like shapes; q_tile=8 and ffn_chunk=128 exercise the sequence-tiling
    # (K/V scratch carry) and intermediate-dim blocking paths.
    B, S, H, NH, ISZ = 2, 16, 128, 4, 256

    key = jax.random.PRNGKey(0)
    k_emb, k_par = jax.random.split(key)
    emb = jax.random.normal(k_emb, (B, S, H), jnp.float32)
    mask = jnp.ones((B, S), jnp.float32).at[1, S - 3:].set(0.0)  # mask last 3 tokens of row 1
    params = init_params(k_par, H, ISZ)

    ref = bert_layer_ref(emb, mask, params, NH)

    # f32 run (tolerance allows the approximate EUP reciprocal in the softmax).
    out = bert_layer(emb, mask, params, NH, q_tile=8, ffn_chunk=128)
    out = jax.block_until_ready(out)
    assert out.shape == (B, S, H)
    assert jnp.allclose(out, ref, atol=2e-3, rtol=2e-3), (
        "f32 kernel mismatch vs JAX reference: max abs err = %g"
        % float(jnp.max(jnp.abs(out - ref))))

    # bf16-weight run (f32 accumulation / f32 softmax & LayerNorm statistics).
    out_bf16 = bert_layer(emb, mask, params, NH, q_tile=8, ffn_chunk=128,
                          param_dtype=jnp.bfloat16)
    out_bf16 = jax.block_until_ready(out_bf16)
    err = float(jnp.max(jnp.abs(out_bf16.astype(jnp.float32) - ref)))
    assert err < 0.1, "bf16 kernel mismatch vs JAX reference: max abs err = %g" % err

    print("KERNEL_OK")
</pallas_src>

<mosaic_0001>
module attributes {stable_mosaic.version = 11 : i64} {
  func.func @bert_layer_kernel(%arg0: i32, %arg1: i32, %arg2: memref<1x16x128xf32, #tpu.memory_space<vmem>>, %arg3: memref<1x1x16xf32, #tpu.memory_space<vmem>>, %arg4: memref<128x128xf32, #tpu.memory_space<vmem>>, %arg5: memref<1x128xf32, #tpu.memory_space<vmem>>, %arg6: memref<128x256xf32, #tpu.memory_space<vmem>>, %arg7: memref<1x256xf32, #tpu.memory_space<vmem>>, %arg8: memref<128x128xf32, #tpu.memory_space<vmem>>, %arg9: memref<1x128xf32, #tpu.memory_space<vmem>>, %arg10: memref<1x128xf32, #tpu.memory_space<vmem>>, %arg11: memref<1x128xf32, #tpu.memory_space<vmem>>, %arg12: memref<128x256xf32, #tpu.memory_space<vmem>>, %arg13: memref<1x256xf32, #tpu.memory_space<vmem>>, %arg14: memref<256x128xf32, #tpu.memory_space<vmem>>, %arg15: memref<1x128xf32, #tpu.memory_space<vmem>>, %arg16: memref<1x128xf32, #tpu.memory_space<vmem>>, %arg17: memref<1x128xf32, #tpu.memory_space<vmem>>, %arg18: memref<1x8x128xf32, #tpu.memory_space<vmem>>, %arg19: memref<16x256xf32, #tpu.memory_space<vmem>>) attributes {dimension_semantics = [#tpu.dimension_semantics<parallel>, #tpu.dimension_semantics<arbitrary>], iteration_bounds = array<i64: 2, 2>, scalar_prefetch = 0 : i64, scratch_operands = 1 : i64, tpu.core_type = #tpu.core_type<tc>, window_params = [{transform_indices = @transform_0, window_bounds = array<i64: 1, 16, 128>}, {transform_indices = @transform_1, window_bounds = array<i64: 1, 1, 16>}, {pipeline_mode = #tpu.pipeline_mode<synchronous>, transform_indices = @transform_2, window_bounds = array<i64: 128, 128>}, {pipeline_mode = #tpu.pipeline_mode<synchronous>, transform_indices = @transform_3, window_bounds = array<i64: 1, 128>}, {pipeline_mode = #tpu.pipeline_mode<synchronous>, transform_indices = @transform_4, window_bounds = array<i64: 128, 256>}, {pipeline_mode = #tpu.pipeline_mode<synchronous>, transform_indices = @transform_5, window_bounds = array<i64: 1, 256>}, {pipeline_mode = #tpu.pipeline_mode<synchronous>, transform_indices = @transform_6, window_bounds = array<i64: 128, 128>}, {pipeline_mode = #tpu.pipeline_mode<synchronous>, transform_indices = @transform_7, window_bounds = array<i64: 1, 128>}, {pipeline_mode = #tpu.pipeline_mode<synchronous>, transform_indices = @transform_8, window_bounds = array<i64: 1, 128>}, {pipeline_mode = #tpu.pipeline_mode<synchronous>, transform_indices = @transform_9, window_bounds = array<i64: 1, 128>}, {pipeline_mode = #tpu.pipeline_mode<synchronous>, transform_indices = @transform_10, window_bounds = array<i64: 128, 256>}, {pipeline_mode = #tpu.pipeline_mode<synchronous>, transform_indices = @transform_11, window_bounds = array<i64: 1, 256>}, {pipeline_mode = #tpu.pipeline_mode<synchronous>, transform_indices = @transform_12, window_bounds = array<i64: 256, 128>}, {pipeline_mode = #tpu.pipeline_mode<synchronous>, transform_indices = @transform_13, window_bounds = array<i64: 1, 128>}, {pipeline_mode = #tpu.pipeline_mode<synchronous>, transform_indices = @transform_14, window_bounds = array<i64: 1, 128>}, {pipeline_mode = #tpu.pipeline_mode<synchronous>, transform_indices = @transform_15, window_bounds = array<i64: 1, 128>}, {transform_indices = @transform_16, window_bounds = array<i64: 1, 8, 128>}]} {
    %c0_i32 = arith.constant 0 : i32
    %0 = arith.cmpi eq, %arg1, %c0_i32 : i32
    %1 = arith.extui %0 : i1 to i32
    %c0_i32_0 = arith.constant 0 : i32
    %2 = arith.cmpi ne, %1, %c0_i32_0 : i32
    scf.if %2 {
      %c0_101 = arith.constant 0 : index
      %c0_102 = arith.constant 0 : index
      %c0_103 = arith.constant 0 : index
      %196 = vector.load %arg2[%c0_101, %c0_102, %c0_103] : memref<1x16x128xf32, #tpu.memory_space<vmem>>, vector<1x16x128xf32>
      %197 = vector.shape_cast %196 : vector<1x16x128xf32> to vector<16x128xf32>
      %c0_104 = arith.constant 0 : index
      %c0_105 = arith.constant 0 : index
      %198 = vector.load %arg6[%c0_104, %c0_105] : memref<128x256xf32, #tpu.memory_space<vmem>>, vector<128x256xf32>
      %cst_106 = arith.constant dense<0.000000e+00> : vector<16x256xf32>
      %199 = tpu.matmul %197, %198, %cst_106 {dimension_numbers = #tpu.dot_dimension_numbers<[1], [0], [0], [1], [0, 0, 1, 1], [], []>} : vector<16x128xf32>, vector<128x256xf32>, vector<16x256xf32> -> vector<16x256xf32>
      %c0_107 = arith.constant 0 : index
      %c0_108 = arith.constant 0 : index
      %200 = vector.load %arg7[%c0_107, %c0_108] : memref<1x256xf32, #tpu.memory_space<vmem>>, vector<1x256xf32>
      %201 = vector.broadcast %200 : vector<1x256xf32> to vector<16x256xf32>
      %202 = arith.addf %199, %201 : vector<16x256xf32>
      %c0_109 = arith.constant 0 : index
      %c0_110 = arith.constant 0 : index
      %203 = vector.load %arg19[%c0_109, %c0_110] : memref<16x256xf32, #tpu.memory_space<vmem>>, vector<16x256xf32>
      tpu.vector_store %arg19[%c0_109, %c0_110], %202 {strides = array<i32>} : memref<16x256xf32, #tpu.memory_space<vmem>>, vector<16x256xf32>,
    } else {
    }
    %c8_i32 = arith.constant 8 : i32
    %3 = arith.muli %arg1, %c8_i32 : i32
    %4 = tpu.assume_multiple %3, 8 : i32
    %c0 = arith.constant 0 : index
    %5 = arith.index_cast %4 : i32 to index
    %c0_1 = arith.constant 0 : index
    %6 = vector.load %arg2[%c0, %5, %c0_1] : memref<1x16x128xf32, #tpu.memory_space<vmem>>, vector<1x8x128xf32>
    %7 = vector.shape_cast %6 : vector<1x8x128xf32> to vector<8x128xf32>
    %c0_2 = arith.constant 0 : index
    %c0_3 = arith.constant 0 : index
    %c0_4 = arith.constant 0 : index
    %8 = vector.load %arg3[%c0_2, %c0_3, %c0_4] : memref<1x1x16xf32, #tpu.memory_space<vmem>>, vector<1x1x16xf32>
    %9 = vector.shape_cast %8 : vector<1x1x16xf32> to vector<1x16xf32>
    %cst = arith.constant 1.000000e+00 : f32
    %10 = vector.broadcast %cst : f32 to vector<1x16xf32>
    %11 = arith.subf %10, %9 : vector<1x16xf32>
    %cst_5 = arith.constant -1.000000e+04 : f32
    %12 = vector.broadcast %cst_5 : f32 to vector<1x16xf32>
    %13 = arith.mulf %11, %12 : vector<1x16xf32>
    %c0_6 = arith.constant 0 : index
    %c0_7 = arith.constant 0 : index
    %14 = vector.load %arg4[%c0_6, %c0_7] : memref<128x128xf32, #tpu.memory_space<vmem>>, vector<128x128xf32>
    %cst_8 = arith.constant dense<0.000000e+00> : vector<8x128xf32>
    %15 = tpu.matmul %7, %14, %cst_8 {dimension_numbers = #tpu.dot_dimension_numbers<[1], [0], [0], [1], [0, 0, 1, 1], [], []>} : vector<8x128xf32>, vector<128x128xf32>, vector<8x128xf32> -> vector<8x128xf32>
    %c0_9 = arith.constant 0 : index
    %c0_10 = arith.constant 0 : index
    %16 = vector.load %arg5[%c0_9, %c0_10] : memref<1x128xf32, #tpu.memory_space<vmem>>, vector<1x128xf32>
    %17 = vector.broadcast %16 : vector<1x128xf32> to vector<8x128xf32>
    %18 = arith.addf %15, %17 : vector<8x128xf32>
    %cst_11 = arith.constant 0.000000e+00 : f32
    %19 = vector.broadcast %cst_11 : f32 to vector<8x128xf32>
    %20 = vector.extract_strided_slice %18 {offsets = [0, 0], sizes = [8, 32], strides = [1, 1]} : vector<8x128xf32> to vector<8x32xf32>
    %c0_12 = arith.constant 0 : index
    %c0_13 = arith.constant 0 : index
    %21 = vector.load %arg19[%c0_12, %c0_13] : memref<16x256xf32, #tpu.memory_space<vmem>>, vector<16x32xf32>
    %c0_14 = arith.constant 0 : index
    %c128 = arith.constant 128 : index
    %22 = vector.load %arg19[%c0_14, %c128] : memref<16x256xf32, #tpu.memory_space<vmem>>, vector<16x32xf32>
    %cst_15 = arith.constant dense<0.000000e+00> : vector<8x16xf32>
    %23 = tpu.matmul %20, %21, %cst_15 {dimension_numbers = #tpu.dot_dimension_numbers<[1], [1], [0], [0], [0, 0, 1, 0], [], []>} : vector<8x32xf32>, vector<16x32xf32>, vector<8x16xf32> -> vector<8x16xf32>
    %cst_16 = arith.constant 0.176776692 : f32
    %24 = vector.broadcast %cst_16 : f32 to vector<8x16xf32>
    %25 = arith.mulf %23, %24 : vector<8x16xf32>
    %26 = vector.broadcast %13 : vector<1x16xf32> to vector<8x16xf32>
    %27 = arith.addf %25, %26 : vector<8x16xf32>
    %cst_17 = arith.constant dense<0xFF800000> : vector<8xf32>
    %28 = vector.multi_reduction <maximumf>, %27, %cst_17 [1] : vector<8x16xf32> to vector<8xf32>
    %29 = vector.shape_cast %28 : vector<8xf32> to vector<8x1xf32>
    %30 = vector.broadcast %29 : vector<8x1xf32> to vector<8x16xf32>
    %31 = arith.subf %27, %30 : vector<8x16xf32>
    %32 = math.exp %31 : vector<8x16xf32>
    %cst_18 = arith.constant dense<0.000000e+00> : vector<8xf32>
    %33 = vector.multi_reduction <add>, %32, %cst_18 [1] : vector<8x16xf32> to vector<8xf32>
    %34 = vector.shape_cast %33 : vector<8xf32> to vector<8x1xf32>
    %35 = tpu.reciprocal %34 {approx = true} : vector<8x1xf32> -> vector<8x1xf32>
    %36 = vector.broadcast %35 : vector<8x1xf32> to vector<8x16xf32>
    %37 = arith.mulf %32, %36 : vector<8x16xf32>
    %cst_19 = arith.constant dense<0.000000e+00> : vector<8x32xf32>
    %38 = tpu.matmul %37, %22, %cst_19 {dimension_numbers = #tpu.dot_dimension_numbers<[1], [0], [0], [1], [0, 0, 1, 1], [], []>} : vector<8x16xf32>, vector<16x32xf32>, vector<8x32xf32> -> vector<8x32xf32>
    %c0_20 = arith.constant 0 : index
    %c0_21 = arith.constant 0 : index
    %39 = vector.load %arg8[%c0_20, %c0_21] : memref<128x128xf32, #tpu.memory_space<vmem>>, vector<32x128xf32>
    %cst_22 = arith.constant dense<0.000000e+00> : vector<8x128xf32>
    %40 = tpu.matmul %38, %39, %cst_22 {dimension_numbers = #tpu.dot_dimension_numbers<[1], [0], [0], [1], [0, 0, 1, 1], [], []>} : vector<8x32xf32>, vector<32x128xf32>, vector<8x128xf32> -> vector<8x128xf32>
    %41 = arith.addf %19, %40 : vector<8x128xf32>
    %42 = vector.extract_strided_slice %18 {offsets = [0, 32], sizes = [8, 32], strides = [1, 1]} : vector<8x128xf32> to vector<8x32xf32>
    %c0_23 = arith.constant 0 : index
    %c32 = arith.constant 32 : index
    %43 = vector.load %arg19[%c0_23, %c32] : memref<16x256xf32, #tpu.memory_space<vmem>>, vector<16x32xf32>
    %c0_24 = arith.constant 0 : index
    %c160 = arith.constant 160 : index
    %44 = vector.load %arg19[%c0_24, %c160] : memref<16x256xf32, #tpu.memory_space<vmem>>, vector<16x32xf32>
    %cst_25 = arith.constant dense<0.000000e+00> : vector<8x16xf32>
    %45 = tpu.matmul %42, %43, %cst_25 {dimension_numbers = #tpu.dot_dimension_numbers<[1], [1], [0], [0], [0, 0, 1, 0], [], []>} : vector<8x32xf32>, vector<16x32xf32>, vector<8x16xf32> -> vector<8x16xf32>
    %cst_26 = arith.constant 0.176776692 : f32
    %46 = vector.broadcast %cst_26 : f32 to vector<8x16xf32>
    %47 = arith.mulf %45, %46 : vector<8x16xf32>
    %48 = vector.broadcast %13 : vector<1x16xf32> to vector<8x16xf32>
    %49 = arith.addf %47, %48 : vector<8x16xf32>
    %cst_27 = arith.constant dense<0xFF800000> : vector<8xf32>
    %50 = vector.multi_reduction <maximumf>, %49, %cst_27 [1] : vector<8x16xf32> to vector<8xf32>
    %51 = vector.shape_cast %50 : vector<8xf32> to vector<8x1xf32>
    %52 = vector.broadcast %51 : vector<8x1xf32> to vector<8x16xf32>
    %53 = arith.subf %49, %52 : vector<8x16xf32>
    %54 = math.exp %53 : vector<8x16xf32>
    %cst_28 = arith.constant dense<0.000000e+00> : vector<8xf32>
    %55 = vector.multi_reduction <add>, %54, %cst_28 [1] : vector<8x16xf32> to vector<8xf32>
    %56 = vector.shape_cast %55 : vector<8xf32> to vector<8x1xf32>
    %57 = tpu.reciprocal %56 {approx = true} : vector<8x1xf32> -> vector<8x1xf32>
    %58 = vector.broadcast %57 : vector<8x1xf32> to vector<8x16xf32>
    %59 = arith.mulf %54, %58 : vector<8x16xf32>
    %cst_29 = arith.constant dense<0.000000e+00> : vector<8x32xf32>
    %60 = tpu.matmul %59, %44, %cst_29 {dimension_numbers = #tpu.dot_dimension_numbers<[1], [0], [0], [1], [0, 0, 1, 1], [], []>} : vector<8x16xf32>, vector<16x32xf32>, vector<8x32xf32> -> vector<8x32xf32>
    %c32_30 = arith.constant 32 : index
    %c0_31 = arith.constant 0 : index
    %61 = vector.load %arg8[%c32_30, %c0_31] : memref<128x128xf32, #tpu.memory_space<vmem>>, vector<32x128xf32>
    %cst_32 = arith.constant dense<0.000000e+00> : vector<8x128xf32>
    %62 = tpu.matmul %60, %61, %cst_32 {dimension_numbers = #tpu.dot_dimension_numbers<[1], [0], [0], [1], [0, 0, 1, 1], [], []>} : vector<8x32xf32>, vector<32x128xf32>, vector<8x128xf32> -> vector<8x128xf32>
    %63 = arith.addf %41, %62 : vector<8x128xf32>
    %64 = vector.extract_strided_slice %18 {offsets = [0, 64], sizes = [8, 32], strides = [1, 1]} : vector<8x128xf32> to vector<8x32xf32>
    %c0_33 = arith.constant 0 : index
    %c64 = arith.constant 64 : index
    %65 = vector.load %arg19[%c0_33, %c64] : memref<16x256xf32, #tpu.memory_space<vmem>>, vector<16x32xf32>
    %c0_34 = arith.constant 0 : index
    %c192 = arith.constant 192 : index
    %66 = vector.load %arg19[%c0_34, %c192] : memref<16x256xf32, #tpu.memory_space<vmem>>, vector<16x32xf32>
    %cst_35 = arith.constant dense<0.000000e+00> : vector<8x16xf32>
    %67 = tpu.matmul %64, %65, %cst_35 {dimension_numbers = #tpu.dot_dimension_numbers<[1], [1], [0], [0], [0, 0, 1, 0], [], []>} : vector<8x32xf32>, vector<16x32xf32>, vector<8x16xf32> -> vector<8x16xf32>
    %cst_36 = arith.constant 0.176776692 : f32
    %68 = vector.broadcast %cst_36 : f32 to vector<8x16xf32>
    %69 = arith.mulf %67, %68 : vector<8x16xf32>
    %70 = vector.broadcast %13 : vector<1x16xf32> to vector<8x16xf32>
    %71 = arith.addf %69, %70 : vector<8x16xf32>
    %cst_37 = arith.constant dense<0xFF800000> : vector<8xf32>
    %72 = vector.multi_reduction <maximumf>, %71, %cst_37 [1] : vector<8x16xf32> to vector<8xf32>
    %73 = vector.shape_cast %72 : vector<8xf32> to vector<8x1xf32>
    %74 = vector.broadcast %73 : vector<8x1xf32> to vector<8x16xf32>
    %75 = arith.subf %71, %74 : vector<8x16xf32>
    %76 = math.exp %75 : vector<8x16xf32>
    %cst_38 = arith.constant dense<0.000000e+00> : vector<8xf32>
    %77 = vector.multi_reduction <add>, %76, %cst_38 [1] : vector<8x16xf32> to vector<8xf32>
    %78 = vector.shape_cast %77 : vector<8xf32> to vector<8x1xf32>
    %79 = tpu.reciprocal %78 {approx = true} : vector<8x1xf32> -> vector<8x1xf32>
    %80 = vector.broadcast %79 : vector<8x1xf32> to vector<8x16xf32>
    %81 = arith.mulf %76, %80 : vector<8x16xf32>
    %cst_39 = arith.constant dense<0.000000e+00> : vector<8x32xf32>
    %82 = tpu.matmul %81, %66, %cst_39 {dimension_numbers = #tpu.dot_dimension_numbers<[1], [0], [0], [1], [0, 0, 1, 1], [], []>} : vector<8x16xf32>, vector<16x32xf32>, vector<8x32xf32> -> vector<8x32xf32>
    %c64_40 = arith.constant 64 : index
    %c0_41 = arith.constant 0 : index
    %83 = vector.load %arg8[%c64_40, %c0_41] : memref<128x128xf32, #tpu.memory_space<vmem>>, vector<32x128xf32>
    %cst_42 = arith.constant dense<0.000000e+00> : vector<8x128xf32>
    %84 = tpu.matmul %82, %83, %cst_42 {dimension_numbers = #tpu.dot_dimension_numbers<[1], [0], [0], [1], [0, 0, 1, 1], [], []>} : vector<8x32xf32>, vector<32x128xf32>, vector<8x128xf32> -> vector<8x128xf32>
    %85 = arith.addf %63, %84 : vector<8x128xf32>
    %86 = vector.extract_strided_slice %18 {offsets = [0, 96], sizes = [8, 32], strides = [1, 1]} : vector<8x128xf32> to vector<8x32xf32>
    %c0_43 = arith.constant 0 : index
    %c96 = arith.constant 96 : index
    %87 = vector.load %arg19[%c0_43, %c96] : memref<16x256xf32, #tpu.memory_space<vmem>>, vector<16x32xf32>
    %c0_44 = arith.constant 0 : index
    %c224 = arith.constant 224 : index
    %88 = vector.load %arg19[%c0_44, %c224] : memref<16x256xf32, #tpu.memory_space<vmem>>, vector<16x32xf32>
    %cst_45 = arith.constant dense<0.000000e+00> : vector<8x16xf32>
    %89 = tpu.matmul %86, %87, %cst_45 {dimension_numbers = #tpu.dot_dimension_numbers<[1], [1], [0], [0], [0, 0, 1, 0], [], []>} : vector<8x32xf32>, vector<16x32xf32>, vector<8x16xf32> -> vector<8x16xf32>
    %cst_46 = arith.constant 0.176776692 : f32
    %90 = vector.broadcast %cst_46 : f32 to vector<8x16xf32>
    %91 = arith.mulf %89, %90 : vector<8x16xf32>
    %92 = vector.broadcast %13 : vector<1x16xf32> to vector<8x16xf32>
    %93 = arith.addf %91, %92 : vector<8x16xf32>
    %cst_47 = arith.constant dense<0xFF800000> : vector<8xf32>
    %94 = vector.multi_reduction <maximumf>, %93, %cst_47 [1] : vector<8x16xf32> to vector<8xf32>
    %95 = vector.shape_cast %94 : vector<8xf32> to vector<8x1xf32>
    %96 = vector.broadcast %95 : vector<8x1xf32> to vector<8x16xf32>
    %97 = arith.subf %93, %96 : vector<8x16xf32>
    %98 = math.exp %97 : vector<8x16xf32>
    %cst_48 = arith.constant dense<0.000000e+00> : vector<8xf32>
    %99 = vector.multi_reduction <add>, %98, %cst_48 [1] : vector<8x16xf32> to vector<8xf32>
    %100 = vector.shape_cast %99 : vector<8xf32> to vector<8x1xf32>
    %101 = tpu.reciprocal %100 {approx = true} : vector<8x1xf32> -> vector<8x1xf32>
    %102 = vector.broadcast %101 : vector<8x1xf32> to vector<8x16xf32>
    %103 = arith.mulf %98, %102 : vector<8x16xf32>
    %cst_49 = arith.constant dense<0.000000e+00> : vector<8x32xf32>
    %104 = tpu.matmul %103, %88, %cst_49 {dimension_numbers = #tpu.dot_dimension_numbers<[1], [0], [0], [1], [0, 0, 1, 1], [], []>} : vector<8x16xf32>, vector<16x32xf32>, vector<8x32xf32> -> vector<8x32xf32>
    %c96_50 = arith.constant 96 : index
    %c0_51 = arith.constant 0 : index
    %105 = vector.load %arg8[%c96_50, %c0_51] : memref<128x128xf32, #tpu.memory_space<vmem>>, vector<32x128xf32>
    %cst_52 = arith.constant dense<0.000000e+00> : vector<8x128xf32>
    %106 = tpu.matmul %104, %105, %cst_52 {dimension_numbers = #tpu.dot_dimension_numbers<[1], [0], [0], [1], [0, 0, 1, 1], [], []>} : vector<8x32xf32>, vector<32x128xf32>, vector<8x128xf32> -> vector<8x128xf32>
    %107 = arith.addf %85, %106 : vector<8x128xf32>
    %c0_53 = arith.constant 0 : index
    %c0_54 = arith.constant 0 : index
    %108 = vector.load %arg9[%c0_53, %c0_54] : memref<1x128xf32, #tpu.memory_space<vmem>>, vector<1x128xf32>
    %109 = vector.broadcast %108 : vector<1x128xf32> to vector<8x128xf32>
    %110 = arith.addf %107, %109 : vector<8x128xf32>
    %111 = arith.addf %110, %7 : vector<8x128xf32>
    %c0_55 = arith.constant 0 : index
    %c0_56 = arith.constant 0 : index
    %112 = vector.load %arg10[%c0_55, %c0_56] : memref<1x128xf32, #tpu.memory_space<vmem>>, vector<1x128xf32>
    %c0_57 = arith.constant 0 : index
    %c0_58 = arith.constant 0 : index
    %113 = vector.load %arg11[%c0_57, %c0_58] : memref<1x128xf32, #tpu.memory_space<vmem>>, vector<1x128xf32>
    %cst_59 = arith.constant dense<0.000000e+00> : vector<8xf32>
    %114 = vector.multi_reduction <add>, %111, %cst_59 [1] : vector<8x128xf32> to vector<8xf32>
    %115 = vector.shape_cast %114 : vector<8xf32> to vector<8x1xf32>
    %cst_60 = arith.constant 1.280000e+02 : f32
    %116 = vector.broadcast %cst_60 : f32 to vector<8x1xf32>
    %117 = arith.divf %115, %116 : vector<8x1xf32>
    %118 = vector.broadcast %117 : vector<8x1xf32> to vector<8x128xf32>
    %119 = arith.subf %111, %118 : vector<8x128xf32>
    %120 = arith.mulf %119, %119 : vector<8x128xf32>
    %cst_61 = arith.constant dense<0.000000e+00> : vector<8xf32>
    %121 = vector.multi_reduction <add>, %120, %cst_61 [1] : vector<8x128xf32> to vector<8xf32>
    %122 = vector.shape_cast %121 : vector<8xf32> to vector<8x1xf32>
    %cst_62 = arith.constant 1.280000e+02 : f32
    %123 = vector.broadcast %cst_62 : f32 to vector<8x1xf32>
    %124 = arith.divf %122, %123 : vector<8x1xf32>
    %cst_63 = arith.constant 9.99999996E-13 : f32
    %125 = vector.broadcast %cst_63 : f32 to vector<8x1xf32>
    %126 = arith.addf %124, %125 : vector<8x1xf32>
    %127 = math.rsqrt %126 : vector<8x1xf32>
    %128 = vector.broadcast %127 : vector<8x1xf32> to vector<8x128xf32>
    %129 = arith.mulf %119, %128 : vector<8x128xf32>
    %130 = vector.broadcast %112 : vector<1x128xf32> to vector<8x128xf32>
    %131 = arith.mulf %130, %129 : vector<8x128xf32>
    %132 = vector.broadcast %113 : vector<1x128xf32> to vector<8x128xf32>
    %133 = arith.addf %131, %132 : vector<8x128xf32>
    %cst_64 = arith.constant 0.000000e+00 : f32
    %134 = vector.broadcast %cst_64 : f32 to vector<8x128xf32>
    %c0_65 = arith.constant 0 : index
    %c0_66 = arith.constant 0 : index
    %135 = vector.load %arg12[%c0_65, %c0_66] : memref<128x256xf32, #tpu.memory_space<vmem>>, vector<128x128xf32>
    %cst_67 = arith.constant dense<0.000000e+00> : vector<8x128xf32>
    %136 = tpu.matmul %133, %135, %cst_67 {dimension_numbers = #tpu.dot_dimension_numbers<[1], [0], [0], [1], [0, 0, 1, 1], [], []>} : vector<8x128xf32>, vector<128x128xf32>, vector<8x128xf32> -> vector<8x128xf32>
    %c0_68 = arith.constant 0 : index
    %c0_69 = arith.constant 0 : index
    %137 = vector.load %arg13[%c0_68, %c0_69] : memref<1x256xf32, #tpu.memory_space<vmem>>, vector<1x128xf32>
    %138 = vector.broadcast %137 : vector<1x128xf32> to vector<8x128xf32>
    %139 = arith.addf %136, %138 : vector<8x128xf32>
    %cst_70 = arith.constant 5.000000e-01 : f32
    %140 = vector.broadcast %cst_70 : f32 to vector<8x128xf32>
    %141 = arith.mulf %140, %139 : vector<8x128xf32>
    %cst_71 = arith.constant 0.707106769 : f32
    %142 = vector.broadcast %cst_71 : f32 to vector<8x128xf32>
    %143 = arith.mulf %139, %142 : vector<8x128xf32>
    %144 = math.erf %143 : vector<8x128xf32>
    %cst_72 = arith.constant 1.000000e+00 : f32
    %145 = vector.broadcast %cst_72 : f32 to vector<8x128xf32>
    %146 = arith.addf %145, %144 : vector<8x128xf32>
    %147 = arith.mulf %141, %146 : vector<8x128xf32>
    %c0_73 = arith.constant 0 : index
    %c0_74 = arith.constant 0 : index
    %148 = vector.load %arg14[%c0_73, %c0_74] : memref<256x128xf32, #tpu.memory_space<vmem>>, vector<128x128xf32>
    %cst_75 = arith.constant dense<0.000000e+00> : vector<8x128xf32>
    %149 = tpu.matmul %147, %148, %cst_75 {dimension_numbers = #tpu.dot_dimension_numbers<[1], [0], [0], [1], [0, 0, 1, 1], [], []>} : vector<8x128xf32>, vector<128x128xf32>, vector<8x128xf32> -> vector<8x128xf32>
    %150 = arith.addf %134, %149 : vector<8x128xf32>
    %c0_76 = arith.constant 0 : index
    %c128_77 = arith.constant 128 : index
    %151 = vector.load %arg12[%c0_76, %c128_77] : memref<128x256xf32, #tpu.memory_space<vmem>>, vector<128x128xf32>
    %cst_78 = arith.constant dense<0.000000e+00> : vector<8x128xf32>
    %152 = tpu.matmul %133, %151, %cst_78 {dimension_numbers = #tpu.dot_dimension_numbers<[1], [0], [0], [1], [0, 0, 1, 1], [], []>} : vector<8x128xf32>, vector<128x128xf32>, vector<8x128xf32> -> vector<8x128xf32>
    %c0_79 = arith.constant 0 : index
    %c128_80 = arith.constant 128 : index
    %153 = vector.load %arg13[%c0_79, %c128_80] : memref<1x256xf32, #tpu.memory_space<vmem>>, vector<1x128xf32>
    %154 = vector.broadcast %153 : vector<1x128xf32> to vector<8x128xf32>
    %155 = arith.addf %152, %154 : vector<8x128xf32>
    %cst_81 = arith.constant 5.000000e-01 : f32
    %156 = vector.broadcast %cst_81 : f32 to vector<8x128xf32>
    %157 = arith.mulf %156, %155 : vector<8x128xf32>
    %cst_82 = arith.constant 0.707106769 : f32
    %158 = vector.broadcast %cst_82 : f32 to vector<8x128xf32>
    %159 = arith.mulf %155, %158 : vector<8x128xf32>
    %160 = math.erf %159 : vector<8x128xf32>
    %cst_83 = arith.constant 1.000000e+00 : f32
    %161 = vector.broadcast %cst_83 : f32 to vector<8x128xf32>
    %162 = arith.addf %161, %160 : vector<8x128xf32>
    %163 = arith.mulf %157, %162 : vector<8x128xf32>
    %c128_84 = arith.constant 128 : index
    %c0_85 = arith.constant 0 : index
    %164 = vector.load %arg14[%c128_84, %c0_85] : memref<256x128xf32, #tpu.memory_space<vmem>>, vector<128x128xf32>
    %cst_86 = arith.constant dense<0.000000e+00> : vector<8x128xf32>
    %165 = tpu.matmul %163, %164, %cst_86 {dimension_numbers = #tpu.dot_dimension_numbers<[1], [0], [0], [1], [0, 0, 1, 1], [], []>} : vector<8x128xf32>, vector<128x128xf32>, vector<8x128xf32> -> vector<8x128xf32>
    %166 = arith.addf %150, %165 : vector<8x128xf32>
    %c0_87 = arith.constant 0 : index
    %c0_88 = arith.constant 0 : index
    %167 = vector.load %arg15[%c0_87, %c0_88] : memref<1x128xf32, #tpu.memory_space<vmem>>, vector<1x128xf32>
    %168 = vector.broadcast %167 : vector<1x128xf32> to vector<8x128xf32>
    %169 = arith.addf %166, %168 : vector<8x128xf32>
    %170 = arith.addf %169, %133 : vector<8x128xf32>
    %c0_89 = arith.constant 0 : index
    %c0_90 = arith.constant 0 : index
    %171 = vector.load %arg16[%c0_89, %c0_90] : memref<1x128xf32, #tpu.memory_space<vmem>>, vector<1x128xf32>
    %c0_91 = arith.constant 0 : index
    %c0_92 = arith.constant 0 : index
    %172 = vector.load %arg17[%c0_91, %c0_92] : memref<1x128xf32, #tpu.memory_space<vmem>>, vector<1x128xf32>
    %cst_93 = arith.constant dense<0.000000e+00> : vector<8xf32>
    %173 = vector.multi_reduction <add>, %170, %cst_93 [1] : vector<8x128xf32> to vector<8xf32>
    %174 = vector.shape_cast %173 : vector<8xf32> to vector<8x1xf32>
    %cst_94 = arith.constant 1.280000e+02 : f32
    %175 = vector.broadcast %cst_94 : f32 to vector<8x1xf32>
    %176 = arith.divf %174, %175 : vector<8x1xf32>
    %177 = vector.broadcast %176 : vector<8x1xf32> to vector<8x128xf32>
    %178 = arith.subf %170, %177 : vector<8x128xf32>
    %179 = arith.mulf %178, %178 : vector<8x128xf32>
    %cst_95 = arith.constant dense<0.000000e+00> : vector<8xf32>
    %180 = vector.multi_reduction <add>, %179, %cst_95 [1] : vector<8x128xf32> to vector<8xf32>
    %181 = vector.shape_cast %180 : vector<8xf32> to vector<8x1xf32>
    %cst_96 = arith.constant 1.280000e+02 : f32
    %182 = vector.broadcast %cst_96 : f32 to vector<8x1xf32>
    %183 = arith.divf %181, %182 : vector<8x1xf32>
    %cst_97 = arith.constant 9.99999996E-13 : f32
    %184 = vector.broadcast %cst_97 : f32 to vector<8x1xf32>
    %185 = arith.addf %183, %184 : vector<8x1xf32>
    %186 = math.rsqrt %185 : vector<8x1xf32>
    %187 = vector.broadcast %186 : vector<8x1xf32> to vector<8x128xf32>
    %188 = arith.mulf %178, %187 : vector<8x128xf32>
    %189 = vector.broadcast %171 : vector<1x128xf32> to vector<8x128xf32>
    %190 = arith.mulf %189, %188 : vector<8x128xf32>
    %191 = vector.broadcast %172 : vector<1x128xf32> to vector<8x128xf32>
    %192 = arith.addf %190, %191 : vector<8x128xf32>
    %c0_98 = arith.constant 0 : index
    %c0_99 = arith.constant 0 : index
    %c0_100 = arith.constant 0 : index
    %193 = vector.load %arg18[%c0_98, %c0_99, %c0_100] : memref<1x8x128xf32, #tpu.memory_space<vmem>>, vector<1x8x128xf32>
    %194 = vector.shape_cast %193 : vector<1x8x128xf32> to vector<8x128xf32>
    %195 = vector.shape_cast %192 : vector<8x128xf32> to vector<1x8x128xf32>
    tpu.vector_store %arg18[%c0_98, %c0_99, %c0_100], %195 {strides = array<i32>} : memref<1x8x128xf32, #tpu.memory_space<vmem>>, vector<1x8x128xf32>,
    return
  }
  func.func @transform_0(%arg0: i32, %arg1: i32) -> (i32, i32, i32) {
    %c0_i32 = arith.constant 0 : i32
    %c0_i32_0 = arith.constant 0 : i32
    %c0_i32_1 = arith.constant 0 : i32
    return %arg0, %c0_i32, %c0_i32_0 : i32, i32, i32
  }
  func.func @transform_1(%arg0: i32, %arg1: i32) -> (i32, i32, i32) {
    %c0_i32 = arith.constant 0 : i32
    %c0_i32_0 = arith.constant 0 : i32
    %c0_i32_1 = arith.constant 0 : i32
    return %arg0, %c0_i32, %c0_i32_0 : i32, i32, i32
  }
  func.func @transform_2(%arg0: i32, %arg1: i32) -> (i32, i32) {
    %c0_i32 = arith.constant 0 : i32
    %c0_i32_0 = arith.constant 0 : i32
    %c0_i32_1 = arith.constant 0 : i32
    return %c0_i32, %c0_i32_0 : i32, i32
  }
  func.func @transform_3(%arg0: i32, %arg1: i32) -> (i32, i32) {
    %c0_i32 = arith.constant 0 : i32
    %c0_i32_0 = arith.constant 0 : i32
    %c0_i32_1 = arith.constant 0 : i32
    return %c0_i32, %c0_i32_0 : i32, i32
  }
  func.func @transform_4(%arg0: i32, %arg1: i32) -> (i32, i32) {
    %c0_i32 = arith.constant 0 : i32
    %c0_i32_0 = arith.constant 0 : i32
    %c0_i32_1 = arith.constant 0 : i32
    return %c0_i32, %c0_i32_0 : i32, i32
  }
  func.func @transform_5(%arg0: i32, %arg1: i32) -> (i32, i32) {
    %c0_i32 = arith.constant 0 : i32
    %c0_i32_0 = arith.constant 0 : i32
    %c0_i32_1 = arith.constant 0 : i32
    return %c0_i32, %c0_i32_0 : i32, i32
  }
  func.func @transform_6(%arg0: i32, %arg1: i32) -> (i32, i32) {
    %c0_i32 = arith.constant 0 : i32
    %c0_i32_0 = arith.constant 0 : i32
    %c0_i32_1 = arith.constant 0 : i32
    return %c0_i32, %c0_i32_0 : i32, i32
  }
  func.func @transform_7(%arg0: i32, %arg1: i32) -> (i32, i32) {
    %c0_i32 = arith.constant 0 : i32
    %c0_i32_0 = arith.constant 0 : i32
    %c0_i32_1 = arith.constant 0 : i32
    return %c0_i32, %c0_i32_0 : i32, i32
  }
  func.func @transform_8(%arg0: i32, %arg1: i32) -> (i32, i32) {
    %c0_i32 = arith.constant 0 : i32
    %c0_i32_0 = arith.constant 0 : i32
    %c0_i32_1 = arith.constant 0 : i32
    return %c0_i32, %c0_i32_0 : i32, i32
  }
  func.func @transform_9(%arg0: i32, %arg1: i32) -> (i32, i32) {
    %c0_i32 = arith.constant 0 : i32
    %c0_i32_0 = arith.constant 0 : i32
    %c0_i32_1 = arith.constant 0 : i32
    return %c0_i32, %c0_i32_0 : i32, i32
  }
  func.func @transform_10(%arg0: i32, %arg1: i32) -> (i32, i32) {
    %c0_i32 = arith.constant 0 : i32
    %c0_i32_0 = arith.constant 0 : i32
    %c0_i32_1 = arith.constant 0 : i32
    return %c0_i32, %c0_i32_0 : i32, i32
  }
  func.func @transform_11(%arg0: i32, %arg1: i32) -> (i32, i32) {
    %c0_i32 = arith.constant 0 : i32
    %c0_i32_0 = arith.constant 0 : i32
    %c0_i32_1 = arith.constant 0 : i32
    return %c0_i32, %c0_i32_0 : i32, i32
  }
  func.func @transform_12(%arg0: i32, %arg1: i32) -> (i32, i32) {
    %c0_i32 = arith.constant 0 : i32
    %c0_i32_0 = arith.constant 0 : i32
    %c0_i32_1 = arith.constant 0 : i32
    return %c0_i32, %c0_i32_0 : i32, i32
  }
  func.func @transform_13(%arg0: i32, %arg1: i32) -> (i32, i32) {
    %c0_i32 = arith.constant 0 : i32
    %c0_i32_0 = arith.constant 0 : i32
    %c0_i32_1 = arith.constant 0 : i32
    return %c0_i32, %c0_i32_0 : i32, i32
  }
  func.func @transform_14(%arg0: i32, %arg1: i32) -> (i32, i32) {
    %c0_i32 = arith.constant 0 : i32
    %c0_i32_0 = arith.constant 0 : i32
    %c0_i32_1 = arith.constant 0 : i32
    return %c0_i32, %c0_i32_0 : i32, i32
  }
  func.func @transform_15(%arg0: i32, %arg1: i32) -> (i32, i32) {
    %c0_i32 = arith.constant 0 : i32
    %c0_i32_0 = arith.constant 0 : i32
    %c0_i32_1 = arith.constant 0 : i32
    return %c0_i32, %c0_i32_0 : i32, i32
  }
  func.func @transform_16(%arg0: i32, %arg1: i32) -> (i32, i32, i32) {
    %c0_i32 = arith.constant 0 : i32
    %c0_i32_0 = arith.constant 0 : i32
    return %arg0, %arg1, %c0_i32 : i32, i32, i32
  }
}

</mosaic_0001>

<llo_original>
// kernel: tpu_custom_call.1
$region0: #{tpu_custom_call.1}
  #allocation0 [shape = 'u32[]', space=smem, size = 0x4, offset = 0x4, fixed_abs, tag = 'smem constant byte address 0x4 - core index']
  #allocation1 [shape = 'u32[144,128]{1,0:T(1,128)}', space=vmem, size = 0x12000, scoped, tag = 'internal scratch']
  #allocation2 [shape = 'f32[16,256]{1,0:T(8,128)}', space=vmem, size = 0x4000, scoped, tag = 'scratch operand']
  %s0 = inlined_call_operand.hbm [shape: f32[2,16,128], index: 0, kind: input, shape index: {}]
  %s1 = inlined_call_operand.vmem [shape: f32[2,1,16], index: 1, kind: input, shape index: {}]
  %s2 = inlined_call_operand.hbm [shape: f32[128,128], index: 2, kind: input, shape index: {}]
  %s3 = inlined_call_operand.vmem [shape: f32[1,128], index: 3, kind: input, shape index: {}]
  %s4 = inlined_call_operand.hbm [shape: f32[128,256], index: 4, kind: input, shape index: {}]
  %s5 = inlined_call_operand.vmem [shape: f32[1,256], index: 5, kind: input, shape index: {}]
  %s6 = inlined_call_operand.hbm [shape: f32[128,128], index: 6, kind: input, shape index: {}]
  %s7 = inlined_call_operand.vmem [shape: f32[1,128], index: 7, kind: input, shape index: {}]
  %s8 = inlined_call_operand.vmem [shape: f32[1,128], index: 8, kind: input, shape index: {}]
  %s9 = inlined_call_operand.vmem [shape: f32[1,128], index: 9, kind: input, shape index: {}]
  %s10 = inlined_call_operand.hbm [shape: f32[128,256], index: 10, kind: input, shape index: {}]
  %s11 = inlined_call_operand.vmem [shape: f32[1,256], index: 11, kind: input, shape index: {}]
  %s12 = inlined_call_operand.hbm [shape: f32[256,128], index: 12, kind: input, shape index: {}]
  %s13 = inlined_call_operand.vmem [shape: f32[1,128], index: 13, kind: input, shape index: {}]
  %s14 = inlined_call_operand.vmem [shape: f32[1,128], index: 14, kind: input, shape index: {}]
  %s15 = inlined_call_operand.vmem [shape: f32[1,128], index: 15, kind: input, shape index: {}]
  %s16 = inlined_call_operand.hbm [shape: f32[2,16,128], index: 16, kind: output, shape index: {}]
  %s17 = sld [smem:[#allocation0]]
  $region125: #{tpu_custom_call.1} parent=0
    _
  %s19 = ssub.s32 1, %s17
  %s20 = scalar_select 0, %s19, %s17
  $region1: #{tpu_custom_call.1} parent=0
    #allocation3 [shape = 'u8[16384]{0}', space=vmem, size = 0x4000, scoped, tag = 'input window, operand 0']
    #allocation4 [shape = 's32[2]{0}', space=sflag, size = 0x8, scoped, tag = 'scoped memory for tpu_custom_call.1']
    #allocation5 [shape = 's32[2]{0}', space=sflag, size = 0x8, scoped, tag = 'scoped memory for tpu_custom_call.1']
    #allocation6 [shape = 'u8[65536]{0}', space=vmem, size = 0x10000, scoped, tag = 'input window, operand 2, single buffered']
    #allocation7 [shape = 's32[1]{0}', space=sflag, size = 0x4, scoped, tag = 'scoped memory for tpu_custom_call.1']
    #allocation8 [shape = 'u8[131072]{0}', space=vmem, size = 0x20000, scoped, tag = 'input window, operand 4, single buffered']
    #allocation9 [shape = 'u8[65536]{0}', space=vmem, size = 0x10000, scoped, tag = 'input window, operand 6, single buffered']
    #allocation10 [shape = 's32[1]{0}', space=sflag, size = 0x4, scoped, tag = 'scoped memory for tpu_custom_call.1']
    #allocation11 [shape = 'u8[131072]{0}', space=vmem, size = 0x20000, scoped, tag = 'input window, operand 10, single buffered']
    #allocation12 [shape = 'u8[131072]{0}', space=vmem, size = 0x20000, scoped, tag = 'input window, operand 12, single buffered']
    #allocation13 [shape = 's32[1]{0}', space=sflag, size = 0x4, scoped, tag = 'scoped memory for tpu_custom_call.1']
    #allocation14 [shape = 'u8[8192]{0}', space=vmem, size = 0x2000, scoped, tag = 'output window, operand 0']
    %21 = vsyncpa [#allocation4], 0
    %s22 = scalar_lea.sflag [#allocation4], 1
    %23 = vsyncpa %s22, 0
    %24 = vsyncpa [#allocation7], 0
    %25 = vsyncpa [#allocation10], 0
    %26 = vsyncpa [#allocation13], 0
    %27 = vsyncpa [#allocation5], 0
    %s28 = scalar_lea.sflag [#allocation5], 1
    %29 = vsyncpa %s28, 0
    loop: start=0, step=1, limit=6
    $region2: #{tpu_custom_call.1} parent=1 // loop_pre_header
      _
    $region3: #{tpu_custom_call.1} parent=1 // loop_header
      %s31 = sphi 0, %s35
      %p32 = scmp.ge.s32.totalorder %s31, 6
      %s38 = sphi 0, %s50
      %s39 = sphi 0, %s46
      %s40 = sphi 0, %s38
      %s41 = sphi 0, %s39
      %s42 = sphi 0, %s40
      %s43 = sphi 0, %s41
      %s53 = sphi 0, %s55
      %s56 = sphi 0, %s53
      %s57 = sphi 0, %s56
      %s73 = sphi 0, %s57
      %s79 = sphi 0, %s81
      %s82 = sphi 0, %s79
      %s83 = sphi 0, %s82
      %s99 = sphi 0, %s83
      %s103 = sphi 0, %s103
      %s105 = sphi 0, %s103
      %s106 = sphi 0, %s105
      %s120 = sphi 0, %s106
      %s124 = sphi 0, %s124
      %s126 = sphi 0, %s124
      %s127 = sphi 0, %s126
      %s141 = sphi 0, %s127
      %s145 = sphi 0, %s145
      %s147 = sphi 0, %s145
      %s148 = sphi 0, %s147
      %s162 = sphi 0, %s148
      %s166 = sphi 0, %s166
      %s168 = sphi 0, %s166
      %s169 = sphi 0, %s168
      %s183 = sphi 0, %s169
      %s187 = sphi 0, %s187
      %s189 = sphi 0, %s187
      %s190 = sphi 0, %s189
      %s204 = sphi 0, %s190
      %s208 = sphi 0, %s208
      %s210 = sphi 0, %s208
      %s211 = sphi 0, %s210
      %s225 = sphi 0, %s211
      %s229 = sphi 0, %s229
      %s231 = sphi 0, %s229
      %s232 = sphi 0, %s231
      %s246 = sphi 0, %s232
      %s250 = sphi 0, %s250
      %s252 = sphi 0, %s250
      %s253 = sphi 0, %s252
      %s267 = sphi 0, %s253
      %s271 = sphi 0, %s271
      %s273 = sphi 0, %s271
      %s274 = sphi 0, %s273
      %s288 = sphi 0, %s274
      %s292 = sphi 0, %s292
      %s294 = sphi 0, %s292
      %s295 = sphi 0, %s294
      %s309 = sphi 0, %s295
      %s313 = sphi 0, %s313
      %s315 = sphi 0, %s313
      %s316 = sphi 0, %s315
      %s330 = sphi 0, %s316
      %s334 = sphi 0, %s334
      %s336 = sphi 0, %s334
      %s337 = sphi 0, %s336
      %s351 = sphi 0, %s337
      %s355 = sphi 0, %s355
      %s357 = sphi 0, %s355
      %s358 = sphi 0, %s357
      %s372 = sphi 0, %s358
      %s376 = sphi 0, %s376
      %s378 = sphi 0, %s376
      %s379 = sphi 0, %s378
      %s393 = sphi 0, %s379
      %s401 = sphi 0, %s403
      %s404 = sphi 0, %s401
      %s405 = sphi 0, %s404
      %s421 = sphi 0, %s405
    $region4: #{tpu_custom_call.1} parent=1 // loop_header_branch
      %34 = sbr.rel (%p32) target = $region8
    $region5: #{tpu_custom_call.1} parent=1 // loop_body
      %s36 = ssub.s32 %s31, 1
      %s37 = ssub.s32 %s31, 2
      %s44 = sadd.s32 1, %s39
      %p45 = scmp.ge.s32.totalorder %s44, 2
      %s46 = scalar_select %p45, 0, %s44
      %s47 = sadd.s32 1, %s38
      %s48 = scalar_select %p45, %s47, %s38
      %p49 = scmp.ge.s32.totalorder %s48, 2
      %s50 = scalar_select %p49, 0, %s48
      %s51 = ssub.s32 %s38, %s50
      %p52 = scmp.eq.s32.totalorder %s51, 0
      %s54 = sadd.s32 %s53, 1
      %s55 = scalar_select %p52, %s53, %s54
      %p58 = pneg %p52
      %p59 = scmp.eq.s32.totalorder %s31, 3
      %p60 = por %p58, %p59
      %p61 = scmp.ne.s32.totalorder %s53, %s56
      %p62 = scmp.eq.s32.totalorder %s31, 0
      %p63 = por %p61, %p62
      %p64 = scmp.ne.s32.totalorder %s53, %s56
      %p65 = scmp.eq.s32.totalorder %s36, 3
      %p66 = por %p64, %p65
      %p67 = scmp.ne.s32.totalorder %s56, %s57
      %p68 = scmp.eq.s32.totalorder %s36, 0
      %p69 = por %p67, %p68
      %p70 = scmp.ne.s32.totalorder %s56, %s57
      %p71 = scmp.eq.s32.totalorder %s37, 3
      %p72 = por %p70, %p71
      %p74 = scmp.ne.s32.totalorder %s57, %s73
      %p75 = scmp.eq.s32.totalorder %s37, 0
      %p76 = por %p74, %p75
      %s77 = ssub.s32 %s38, %s50
      %p78 = scmp.eq.s32.totalorder %s77, 0
      %s80 = sadd.s32 %s79, 1
      %s81 = scalar_select %p78, %s79, %s80
      %p84 = pneg %p78
      %p85 = scmp.eq.s32.totalorder %s31, 3
      %p86 = por %p84, %p85
      %p87 = scmp.ne.s32.totalorder %s79, %s82
      %p88 = scmp.eq.s32.totalorder %s31, 0
      %p89 = por %p87, %p88
      %p90 = scmp.ne.s32.totalorder %s79, %s82
      %p91 = scmp.eq.s32.totalorder %s36, 3
      %p92 = por %p90, %p91
      %p93 = scmp.ne.s32.totalorder %s82, %s83
      %p94 = scmp.eq.s32.totalorder %s36, 0
      %p95 = por %p93, %p94
      %p96 = scmp.ne.s32.totalorder %s82, %s83
      %p97 = scmp.eq.s32.totalorder %s37, 3
      %p98 = por %p96, %p97
      %p100 = scmp.ne.s32.totalorder %s83, %s99
      %p101 = scmp.eq.s32.totalorder %s37, 0
      %p102 = por %p100, %p101
      %s104 = sadd.s32 %s103, 1
      %p107 = scmp.eq.s32.totalorder %s31, 3
      %p108 = scmp.ne.s32.totalorder %s103, %s105
      %p109 = scmp.eq.s32.totalorder %s31, 0
      %p110 = por %p108, %p109
      %p111 = scmp.ne.s32.totalorder %s103, %s105
      %p112 = scmp.eq.s32.totalorder %s36, 3
      %p113 = por %p111, %p112
      %p114 = scmp.ne.s32.totalorder %s105, %s106
      %p115 = scmp.eq.s32.totalorder %s36, 0
      %p116 = por %p114, %p115
      %p117 = scmp.ne.s32.totalorder %s105, %s106
      %p118 = scmp.eq.s32.totalorder %s37, 3
      %p119 = por %p117, %p118
      %p121 = scmp.ne.s32.totalorder %s106, %s120
      %p122 = scmp.eq.s32.totalorder %s37, 0
      %p123 = por %p121, %p122
      %s125 = sadd.s32 %s124, 1
      %p128 = scmp.eq.s32.totalorder %s31, 3
      %p129 = scmp.ne.s32.totalorder %s124, %s126
      %p130 = scmp.eq.s32.totalorder %s31, 0
      %p131 = por %p129, %p130
      %p132 = scmp.ne.s32.totalorder %s124, %s126
      %p133 = scmp.eq.s32.totalorder %s36, 3
      %p134 = por %p132, %p133
      %p135 = scmp.ne.s32.totalorder %s126, %s127
      %p136 = scmp.eq.s32.totalorder %s36, 0
      %p137 = por %p135, %p136
      %p138 = scmp.ne.s32.totalorder %s126, %s127
      %p139 = scmp.eq.s32.totalorder %s37, 3
      %p140 = por %p138, %p139
      %p142 = scmp.ne.s32.totalorder %s127, %s141
      %p143 = scmp.eq.s32.totalorder %s37, 0
      %p144 = por %p142, %p143
      %s146 = sadd.s32 %s145, 1
      %p149 = scmp.eq.s32.totalorder %s31, 3
      %p150 = scmp.ne.s32.totalorder %s145, %s147
      %p151 = scmp.eq.s32.totalorder %s31, 0
      %p152 = por %p150, %p151
      %p153 = scmp.ne.s32.totalorder %s145, %s147
      %p154 = scmp.eq.s32.totalorder %s36, 3
      %p155 = por %p153, %p154
      %p156 = scmp.ne.s32.totalorder %s147, %s148
      %p157 = scmp.eq.s32.totalorder %s36, 0
      %p158 = por %p156, %p157
      %p159 = scmp.ne.s32.totalorder %s147, %s148
      %p160 = scmp.eq.s32.totalorder %s37, 3
      %p161 = por %p159, %p160
      %p163 = scmp.ne.s32.totalorder %s148, %s162
      %p164 = scmp.eq.s32.totalorder %s37, 0
      %p165 = por %p163, %p164
      %s167 = sadd.s32 %s166, 1
      %p170 = scmp.eq.s32.totalorder %s31, 3
      %p171 = scmp.ne.s32.totalorder %s166, %s168
      %p172 = scmp.eq.s32.totalorder %s31, 0
      %p173 = por %p171, %p172
      %p174 = scmp.ne.s32.totalorder %s166, %s168
      %p175 = scmp.eq.s32.totalorder %s36, 3
      %p176 = por %p174, %p175
      %p177 = scmp.ne.s32.totalorder %s168, %s169
      %p178 = scmp.eq.s32.totalorder %s36, 0
      %p179 = por %p177, %p178
      %p180 = scmp.ne.s32.totalorder %s168, %s169
      %p181 = scmp.eq.s32.totalorder %s37, 3
      %p182 = por %p180, %p181
      %p184 = scmp.ne.s32.totalorder %s169, %s183
      %p185 = scmp.eq.s32.totalorder %s37, 0
      %p186 = por %p184, %p185
      %s188 = sadd.s32 %s187, 1
      %p191 = scmp.eq.s32.totalorder %s31, 3
      %p192 = scmp.ne.s32.totalorder %s187, %s189
      %p193 = scmp.eq.s32.totalorder %s31, 0
      %p194 = por %p192, %p193
      %p195 = scmp.ne.s32.totalorder %s187, %s189
      %p196 = scmp.eq.s32.totalorder %s36, 3
      %p197 = por %p195, %p196
      %p198 = scmp.ne.s32.totalorder %s189, %s190
      %p199 = scmp.eq.s32.totalorder %s36, 0
      %p200 = por %p198, %p199
      %p201 = scmp.ne.s32.totalorder %s189, %s190
      %p202 = scmp.eq.s32.totalorder %s37, 3
      %p203 = por %p201, %p202
      %p205 = scmp.ne.s32.totalorder %s190, %s204
      %p206 = scmp.eq.s32.totalorder %s37, 0
      %p207 = por %p205, %p206
      %s209 = sadd.s32 %s208, 1
      %p212 = scmp.eq.s32.totalorder %s31, 3
      %p213 = scmp.ne.s32.totalorder %s208, %s210
      %p214 = scmp.eq.s32.totalorder %s31, 0
      %p215 = por %p213, %p214
      %p216 = scmp.ne.s32.totalorder %s208, %s210
      %p217 = scmp.eq.s32.totalorder %s36, 3
      %p218 = por %p216, %p217
      %p219 = scmp.ne.s32.totalorder %s210, %s211
      %p220 = scmp.eq.s32.totalorder %s36, 0
      %p221 = por %p219, %p220
      %p222 = scmp.ne.s32.totalorder %s210, %s211
      %p223 = scmp.eq.s32.totalorder %s37, 3
      %p224 = por %p222, %p223
      %p226 = scmp.ne.s32.totalorder %s211, %s225
      %p227 = scmp.eq.s32.totalorder %s37, 0
      %p228 = por %p226, %p227
      %s230 = sadd.s32 %s229, 1
      %p233 = scmp.eq.s32.totalorder %s31, 3
      %p234 = scmp.ne.s32.totalorder %s229, %s231
      %p235 = scmp.eq.s32.totalorder %s31, 0
      %p236 = por %p234, %p235
      %p237 = scmp.ne.s32.totalorder %s229, %s231
      %p238 = scmp.eq.s32.totalorder %s36, 3
      %p239 = por %p237, %p238
      %p240 = scmp.ne.s32.totalorder %s231, %s232
      %p241 = scmp.eq.s32.totalorder %s36, 0
      %p242 = por %p240, %p241
      %p243 = scmp.ne.s32.totalorder %s231, %s232
      %p244 = scmp.eq.s32.totalorder %s37, 3
      %p245 = por %p243, %p244
      %p247 = scmp.ne.s32.totalorder %s232, %s246
      %p248 = scmp.eq.s32.totalorder %s37, 0
      %p249 = por %p247, %p248
      %s251 = sadd.s32 %s250, 1
      %p254 = scmp.eq.s32.totalorder %s31, 3
      %p255 = scmp.ne.s32.totalorder %s250, %s252
      %p256 = scmp.eq.s32.totalorder %s31, 0
      %p257 = por %p255, %p256
      %p258 = scmp.ne.s32.totalorder %s250, %s252
      %p259 = scmp.eq.s32.totalorder %s36, 3
      %p260 = por %p258, %p259
      %p261 = scmp.ne.s32.totalorder %s252, %s253
      %p262 = scmp.eq.s32.totalorder %s36, 0
      %p263 = por %p261, %p262
      %p264 = scmp.ne.s32.totalorder %s252, %s253
      %p265 = scmp.eq.s32.totalorder %s37, 3
      %p266 = por %p264, %p265
      %p268 = scmp.ne.s32.totalorder %s253, %s267
      %p269 = scmp.eq.s32.totalorder %s37, 0
      %p270 = por %p268, %p269
      %s272 = sadd.s32 %s271, 1
      %p275 = scmp.eq.s32.totalorder %s31, 3
      %p276 = scmp.ne.s32.totalorder %s271, %s273
      %p277 = scmp.eq.s32.totalorder %s31, 0
      %p278 = por %p276, %p277
      %p279 = scmp.ne.s32.totalorder %s271, %s273
      %p280 = scmp.eq.s32.totalorder %s36, 3
      %p281 = por %p279, %p280
      %p282 = scmp.ne.s32.totalorder %s273, %s274
      %p283 = scmp.eq.s32.totalorder %s36, 0
      %p284 = por %p282, %p283
      %p285 = scmp.ne.s32.totalorder %s273, %s274
      %p286 = scmp.eq.s32.totalorder %s37, 3
      %p287 = por %p285, %p286
      %p289 = scmp.ne.s32.totalorder %s274, %s288
      %p290 = scmp.eq.s32.totalorder %s37, 0
      %p291 = por %p289, %p290
      %s293 = sadd.s32 %s292, 1
      %p296 = scmp.eq.s32.totalorder %s31, 3
      %p297 = scmp.ne.s32.totalorder %s292, %s294
      %p298 = scmp.eq.s32.totalorder %s31, 0
      %p299 = por %p297, %p298
      %p300 = scmp.ne.s32.totalorder %s292, %s294
      %p301 = scmp.eq.s32.totalorder %s36, 3
      %p302 = por %p300, %p301
      %p303 = scmp.ne.s32.totalorder %s294, %s295
      %p304 = scmp.eq.s32.totalorder %s36, 0
      %p305 = por %p303, %p304
      %p306 = scmp.ne.s32.totalorder %s294, %s295
      %p307 = scmp.eq.s32.totalorder %s37, 3
      %p308 = por %p306, %p307
      %p310 = scmp.ne.s32.totalorder %s295, %s309
      %p311 = scmp.eq.s32.totalorder %s37, 0
      %p312 = por %p310, %p311
      %s314 = sadd.s32 %s313, 1
      %p317 = scmp.eq.s32.totalorder %s31, 3
      %p318 = scmp.ne.s32.totalorder %s313, %s315
      %p319 = scmp.eq.s32.totalorder %s31, 0
      %p320 = por %p318, %p319
      %p321 = scmp.ne.s32.totalorder %s313, %s315
      %p322 = scmp.eq.s32.totalorder %s36, 3
      %p323 = por %p321, %p322
      %p324 = scmp.ne.s32.totalorder %s315, %s316
      %p325 = scmp.eq.s32.totalorder %s36, 0
      %p326 = por %p324, %p325
      %p327 = scmp.ne.s32.totalorder %s315, %s316
      %p328 = scmp.eq.s32.totalorder %s37, 3
      %p329 = por %p327, %p328
      %p331 = scmp.ne.s32.totalorder %s316, %s330
      %p332 = scmp.eq.s32.totalorder %s37, 0
      %p333 = por %p331, %p332
      %s335 = sadd.s32 %s334, 1
      %p338 = scmp.eq.s32.totalorder %s31, 3
      %p339 = scmp.ne.s32.totalorder %s334, %s336
      %p340 = scmp.eq.s32.totalorder %s31, 0
      %p341 = por %p339, %p340
      %p342 = scmp.ne.s32.totalorder %s334, %s336
      %p343 = scmp.eq.s32.totalorder %s36, 3
      %p344 = por %p342, %p343
      %p345 = scmp.ne.s32.totalorder %s336, %s337
      %p346 = scmp.eq.s32.totalorder %s36, 0
      %p347 = por %p345, %p346
      %p348 = scmp.ne.s32.totalorder %s336, %s337
      %p349 = scmp.eq.s32.totalorder %s37, 3
      %p350 = por %p348, %p349
      %p352 = scmp.ne.s32.totalorder %s337, %s351
      %p353 = scmp.eq.s32.totalorder %s37, 0
      %p354 = por %p352, %p353
      %s356 = sadd.s32 %s355, 1
      %p359 = scmp.eq.s32.totalorder %s31, 3
      %p360 = scmp.ne.s32.totalorder %s355, %s357
      %p361 = scmp.eq.s32.totalorder %s31, 0
      %p362 = por %p360, %p361
      %p363 = scmp.ne.s32.totalorder %s355, %s357
      %p364 = scmp.eq.s32.totalorder %s36, 3
      %p365 = por %p363, %p364
      %p366 = scmp.ne.s32.totalorder %s357, %s358
      %p367 = scmp.eq.s32.totalorder %s36, 0
      %p368 = por %p366, %p367
      %p369 = scmp.ne.s32.totalorder %s357, %s358
      %p370 = scmp.eq.s32.totalorder %s37, 3
      %p371 = por %p369, %p370
      %p373 = scmp.ne.s32.totalorder %s358, %s372
      %p374 = scmp.eq.s32.totalorder %s37, 0
      %p375 = por %p373, %p374
      %s377 = sadd.s32 %s376, 1
      %p380 = scmp.eq.s32.totalorder %s31, 3
      %p381 = scmp.ne.s32.totalorder %s376, %s378
      %p382 = scmp.eq.s32.totalorder %s31, 0
      %p383 = por %p381, %p382
      %p384 = scmp.ne.s32.totalorder %s376, %s378
      %p385 = scmp.eq.s32.totalorder %s36, 3
      %p386 = por %p384, %p385
      %p387 = scmp.ne.s32.totalorder %s378, %s379
      %p388 = scmp.eq.s32.totalorder %s36, 0
      %p389 = por %p387, %p388
      %p390 = scmp.ne.s32.totalorder %s378, %s379
      %p391 = scmp.eq.s32.totalorder %s37, 3
      %p392 = por %p390, %p391
      %p394 = scmp.ne.s32.totalorder %s379, %s393
      %p395 = scmp.eq.s32.totalorder %s37, 0
      %p396 = por %p394, %p395
      %s397 = ssub.s32 %s38, %s50
      %s398 = ssub.s32 %s39, %s46
      %s399 = sor.u32 %s397, %s398
      %p400 = scmp.eq.s32.totalorder %s399, 0
      %s402 = sadd.s32 %s401, 1
      %s403 = scalar_select %p400, %s401, %s402
      %p406 = pneg %p400
      %p407 = scmp.eq.s32.totalorder %s31, 3
      %p408 = por %p406, %p407
      %p409 = scmp.ne.s32.totalorder %s401, %s404
      %p410 = scmp.eq.s32.totalorder %s31, 0
      %p411 = por %p409, %p410
      %p412 = scmp.ne.s32.totalorder %s401, %s404
      %p413 = scmp.eq.s32.totalorder %s36, 3
      %p414 = por %p412, %p413
      %p415 = scmp.ne.s32.totalorder %s404, %s405
      %p416 = scmp.eq.s32.totalorder %s36, 0
      %p417 = por %p415, %p416
      %p418 = scmp.ne.s32.totalorder %s404, %s405
      %p419 = scmp.eq.s32.totalorder %s37, 3
      %p420 = por %p418, %p419
      %p422 = scmp.ne.s32.totalorder %s405, %s421
      %p423 = scmp.eq.s32.totalorder %s37, 0
      %p424 = por %p422, %p423
      %p425 = scmp.le.s32.totalorder 1, %s31
      %p426 = scmp.lt.s32.totalorder %s31, 5
      %p427 = pnand %p425, %p426
      %p428 = pneg %p427
      // Predicated region
      $region9: #{tpu_custom_call.1} parent=5 // pred_check
        _
      $region10: #{tpu_custom_call.1} parent=5 // pred_check_branch
        %430 = sbr.rel (%p427) target = $region12
      $region11: #{tpu_custom_call.1} parent=5 // pred_region
        %s431 = ssub.s32 %s31, 1
        // Predicated region
        $region13: #{tpu_custom_call.1} parent=11 // pred_check
          %p432 = pneg %p116
        $region14: #{tpu_custom_call.1} parent=11 // pred_check_branch
          %434 = sbr.rel (%p432) target = $region16
        $region15: #{tpu_custom_call.1} parent=11 // pred_region
          %s436 = ssub.s32 2048, 2048
          %437 = vsyncadd [#allocation7], %s436
          %s438 = sshll.u32 [#allocation6], 4
          %s439 = int_to_ptr.vmem [resolvable:$true] %s438
          %444 = dma.hbm_to_vmem [thread:$0]  %s2, 2048, %s439, [#allocation7], 128, 128, 8
        $region16: #{tpu_custom_call.1} parent=11 // pred_fallthru
          _
        // Predicated region
        $region17: #{tpu_custom_call.1} parent=11 // pred_check
          %p445 = pneg %p137
        $region18: #{tpu_custom_call.1} parent=11 // pred_check_branch
          %447 = sbr.rel (%p445) target = $region20
        $region19: #{tpu_custom_call.1} parent=11 // pred_region
          _
        $region20: #{tpu_custom_call.1} parent=11 // pred_fallthru
          _
        // Predicated region
        $region21: #{tpu_custom_call.1} parent=11 // pred_check
          %p448 = pneg %p158
        $region22: #{tpu_custom_call.1} parent=11 // pred_check_branch
          %450 = sbr.rel (%p448) target = $region24
        $region23: #{tpu_custom_call.1} parent=11 // pred_region
          %s452 = ssub.s32 4096, 4096
          %453 = vsyncadd [#allocation7], %s452
          %s454 = sshll.u32 [#allocation8], 4
          %s455 = int_to_ptr.vmem [resolvable:$true] %s454
          %460 = dma.hbm_to_vmem [thread:$0]  %s4, 4096, %s455, [#allocation7], 256, 256, 16
        $region24: #{tpu_custom_call.1} parent=11 // pred_fallthru
          _
        // Predicated region
        $region25: #{tpu_custom_call.1} parent=11 // pred_check
          %p461 = pneg %p179
        $region26: #{tpu_custom_call.1} parent=11 // pred_check_branch
          %463 = sbr.rel (%p461) target = $region28
        $region27: #{tpu_custom_call.1} parent=11 // pred_region
          _
        $region28: #{tpu_custom_call.1} parent=11 // pred_fallthru
          _
        // Predicated region
        $region29: #{tpu_custom_call.1} parent=11 // pred_check
          %p464 = pneg %p200
        $region30: #{tpu_custom_call.1} parent=11 // pred_check_branch
          %466 = sbr.rel (%p464) target = $region32
        $region31: #{tpu_custom_call.1} parent=11 // pred_region
          %s468 = ssub.s32 2048, 2048
          %469 = vsyncadd [#allocation10], %s468
          %s470 = sshll.u32 [#allocation9], 4
          %s471 = int_to_ptr.vmem [resolvable:$true] %s470
          %476 = dma.hbm_to_vmem [thread:$0]  %s6, 2048, %s471, [#allocation10], 128, 128, 8
        $region32: #{tpu_custom_call.1} parent=11 // pred_fallthru
          _
        // Predicated region
        $region33: #{tpu_custom_call.1} parent=11 // pred_check
          %p477 = pneg %p221
        $region34: #{tpu_custom_call.1} parent=11 // pred_check_branch
          %479 = sbr.rel (%p477) target = $region36
        $region35: #{tpu_custom_call.1} parent=11 // pred_region
          _
        $region36: #{tpu_custom_call.1} parent=11 // pred_fallthru
          _
        // Predicated region
        $region37: #{tpu_custom_call.1} parent=11 // pred_check
          %p480 = pneg %p242
        $region38: #{tpu_custom_call.1} parent=11 // pred_check_branch
          %482 = sbr.rel (%p480) target = $region40
        $region39: #{tpu_custom_call.1} parent=11 // pred_region
          _
        $region40: #{tpu_custom_call.1} parent=11 // pred_fallthru
          _
        // Predicated region
        $region41: #{tpu_custom_call.1} parent=11 // pred_check
          %p483 = pneg %p263
        $region42: #{tpu_custom_call.1} parent=11 // pred_check_branch
          %485 = sbr.rel (%p483) target = $region44
        $region43: #{tpu_custom_call.1} parent=11 // pred_region
          _
        $region44: #{tpu_custom_call.1} parent=11 // pred_fallthru
          _
        // Predicated region
        $region45: #{tpu_custom_call.1} parent=11 // pred_check
          %p486 = pneg %p284
        $region46: #{tpu_custom_call.1} parent=11 // pred_check_branch
          %488 = sbr.rel (%p486) target = $region48
        $region47: #{tpu_custom_call.1} parent=11 // pred_region
          %s490 = ssub.s32 4096, 4096
          %491 = vsyncadd [#allocation10], %s490
          %s492 = sshll.u32 [#allocation11], 4
          %s493 = int_to_ptr.vmem [resolvable:$true] %s492
          %498 = dma.hbm_to_vmem [thread:$0]  %s10, 4096, %s493, [#allocation10], 256, 256, 16
        $region48: #{tpu_custom_call.1} parent=11 // pred_fallthru
          _
        // Predicated region
        $region49: #{tpu_custom_call.1} parent=11 // pred_check
          %p499 = pneg %p305
        $region50: #{tpu_custom_call.1} parent=11 // pred_check_branch
          %501 = sbr.rel (%p499) target = $region52
        $region51: #{tpu_custom_call.1} parent=11 // pred_region
          _
        $region52: #{tpu_custom_call.1} parent=11 // pred_fallthru
          _
        // Predicated region
        $region53: #{tpu_custom_call.1} parent=11 // pred_check
          %p502 = pneg %p326
        $region54: #{tpu_custom_call.1} parent=11 // pred_check_branch
          %504 = sbr.rel (%p502) target = $region56
        $region55: #{tpu_custom_call.1} parent=11 // pred_region
          %s506 = ssub.s32 4096, 4096
          %507 = vsyncadd [#allocation13], %s506
          %s508 = sshll.u32 [#allocation12], 4
          %s509 = int_to_ptr.vmem [resolvable:$true] %s508
          %514 = dma.hbm_to_vmem [thread:$0]  %s12, 4096, %s509, [#allocation13], 128, 128, 8
        $region56: #{tpu_custom_call.1} parent=11 // pred_fallthru
          _
        // Predicated region
        $region57: #{tpu_custom_call.1} parent=11 // pred_check
          %p515 = pneg %p347
        $region58: #{tpu_custom_call.1} parent=11 // pred_check_branch
          %517 = sbr.rel (%p515) target = $region60
        $region59: #{tpu_custom_call.1} parent=11 // pred_region
          _
        $region60: #{tpu_custom_call.1} parent=11 // pred_fallthru
          _
        // Predicated region
        $region61: #{tpu_custom_call.1} parent=11 // pred_check
          %p518 = pneg %p368
        $region62: #{tpu_custom_call.1} parent=11 // pred_check_branch
          %520 = sbr.rel (%p518) target = $region64
        $region63: #{tpu_custom_call.1} parent=11 // pred_region
          _
        $region64: #{tpu_custom_call.1} parent=11 // pred_fallthru
          _
        // Predicated region
        $region65: #{tpu_custom_call.1} parent=11 // pred_check
          %p521 = pneg %p389
        $region66: #{tpu_custom_call.1} parent=11 // pred_check_branch
          %523 = sbr.rel (%p521) target = $region68
        $region67: #{tpu_custom_call.1} parent=11 // pred_region
          _
        $region68: #{tpu_custom_call.1} parent=11 // pred_fallthru
          _
      $region12: #{tpu_custom_call.1} parent=5 // pred_fallthru
        _
      %p524 = scmp.lt.s32.totalorder %s31, 4
      // Predicated region
      $region69: #{tpu_custom_call.1} parent=5 // pred_check
        %p525 = pneg %p524
      $region70: #{tpu_custom_call.1} parent=5 // pred_check_branch
        %527 = sbr.rel (%p525) target = $region72
      $region71: #{tpu_custom_call.1} parent=5 // pred_region
        // Predicated region
        $region73: #{tpu_custom_call.1} parent=71 // pred_check
          %p528 = pneg %p63
        $region74: #{tpu_custom_call.1} parent=71 // pred_check_branch
          %530 = sbr.rel (%p528) target = $region76
        $region75: #{tpu_custom_call.1} parent=71 // pred_region
          %s531 = sand.u32 %s53, 1
          %s532 = scalar_lea.sflag [#allocation4], %s531
          %s533 = sand.u32 %s53, 1
          %s534 = smul.addr %s533, 16
          %s535 = scalar_lea.vmem [#allocation3], %s534
          %s537 = ssub.s32 256, 256
          %538 = vsyncadd %s532, %s537
          %s539 = smul.addr %s38, 2
          %s540 = smul.addr %s539, 128
          %s541 = scalar_lea.hbm %s0, %s540
          %s542 = sshll.u32 %s535, 4
          %s543 = int_to_ptr.vmem [resolvable:$true] %s542
          %548 = dma.hbm_to_vmem [thread:$0]  %s541, 256, %s543, %s532, 128, 128, 8
        $region76: #{tpu_custom_call.1} parent=71 // pred_fallthru
          _
        // Predicated region
        $region77: #{tpu_custom_call.1} parent=71 // pred_check
          %p549 = pneg %p89
        $region78: #{tpu_custom_call.1} parent=71 // pred_check_branch
          %551 = sbr.rel (%p549) target = $region80
        $region79: #{tpu_custom_call.1} parent=71 // pred_region
          %p552 = scmp.lt.s32.totalorder %s38, 1
          %s553 = scalar_select %p552, %s38, 1
          %s554 = scalar_lea.vmem %s1, %s553
        $region80: #{tpu_custom_call.1} parent=71 // pred_fallthru
          _
      $region72: #{tpu_custom_call.1} parent=5 // pred_fallthru
        _
      %p555 = scmp.le.s32.totalorder 1, %s31
      %p556 = scmp.lt.s32.totalorder %s31, 5
      %p557 = pnand %p555, %p556
      %p558 = pneg %p557
      // Predicated region
      $region81: #{tpu_custom_call.1} parent=5 // pred_check
        _
      $region82: #{tpu_custom_call.1} parent=5 // pred_check_branch
        %560 = sbr.rel (%p557) target = $region84
      $region83: #{tpu_custom_call.1} parent=5 // pred_region
        %s561 = ssub.s32 %s31, 1
        %s562 = sand.u32 %s56, 1
        %s563 = scalar_lea.sflag [#allocation4], %s562
        %s564 = sand.u32 %s56, 1
        %s565 = smul.addr %s564, 16
        %s566 = scalar_lea.vmem [#allocation3], %s565
        // Predicated region
        $region85: #{tpu_custom_call.1} parent=83 // pred_check
          %p567 = pneg %p69
        $region86: #{tpu_custom_call.1} parent=83 // pred_check_branch
          %569 = sbr.rel (%p567) target = $region88
        $region87: #{tpu_custom_call.1} parent=83 // pred_region
          %570 = dma.done %s563, 256
        $region88: #{tpu_custom_call.1} parent=83 // pred_fallthru
          _
        // Predicated region
        $region89: #{tpu_custom_call.1} parent=83 // pred_check
          %p571 = pneg %p116
        $region90: #{tpu_custom_call.1} parent=83 // pred_check_branch
          %573 = sbr.rel (%p571) target = $region92
        $region91: #{tpu_custom_call.1} parent=83 // pred_region
          %574 = dma.done [#allocation7], 2048
        $region92: #{tpu_custom_call.1} parent=83 // pred_fallthru
          _
        // Predicated region
        $region93: #{tpu_custom_call.1} parent=83 // pred_check
          %p575 = pneg %p158
        $region94: #{tpu_custom_call.1} parent=83 // pred_check_branch
          %577 = sbr.rel (%p575) target = $region96
        $region95: #{tpu_custom_call.1} parent=83 // pred_region
          %578 = dma.done [#allocation7], 4096
        $region96: #{tpu_custom_call.1} parent=83 // pred_fallthru
          _
        // Predicated region
        $region97: #{tpu_custom_call.1} parent=83 // pred_check
          %p579 = pneg %p200
        $region98: #{tpu_custom_call.1} parent=83 // pred_check_branch
          %581 = sbr.rel (%p579) target = $region100
        $region99: #{tpu_custom_call.1} parent=83 // pred_region
          %582 = dma.done [#allocation10], 2048
        $region100: #{tpu_custom_call.1} parent=83 // pred_fallthru
          _
        // Predicated region
        $region101: #{tpu_custom_call.1} parent=83 // pred_check
          %p583 = pneg %p284
        $region102: #{tpu_custom_call.1} parent=83 // pred_check_branch
          %585 = sbr.rel (%p583) target = $region104
        $region103: #{tpu_custom_call.1} parent=83 // pred_region
          %586 = dma.done [#allocation10], 4096
        $region104: #{tpu_custom_call.1} parent=83 // pred_fallthru
          _
        // Predicated region
        $region105: #{tpu_custom_call.1} parent=83 // pred_check
          %p587 = pneg %p326
        $region106: #{tpu_custom_call.1} parent=83 // pred_check_branch
          %589 = sbr.rel (%p587) target = $region108
        $region107: #{tpu_custom_call.1} parent=83 // pred_region
          %590 = dma.done [#allocation13], 4096
        $region108: #{tpu_custom_call.1} parent=83 // pred_fallthru
          _
        %s591 = sand.u32 %s56, 1
        %s592 = scalar_lea.sflag [#allocation4], %s591
        %s593 = sand.u32 %s56, 1
        %s594 = smul.addr %s593, 16
        %s595 = scalar_lea.vmem [#allocation3], %s594
        %p596 = pneg %p69
        %p597 = pneg %p66
        %p598 = scmp.lt.s32.totalorder %s40, 1
        %s599 = scalar_select %p598, %s40, 1
        %s600 = scalar_lea.vmem %s1, %s599
        %p601 = pneg %p95
        %p602 = pneg %p92
        %p603 = pneg %p116
        %p604 = pneg %p113
        %p605 = pneg %p137
        %p606 = pneg %p134
        %p607 = pneg %p158
        %p608 = pneg %p155
        %p609 = pneg %p179
        %p610 = pneg %p176
        %p611 = pneg %p200
        %p612 = pneg %p197
        %p613 = pneg %p221
        %p614 = pneg %p218
        %p615 = pneg %p242
        %p616 = pneg %p239
        %p617 = pneg %p263
        %p618 = pneg %p260
        %p619 = pneg %p284
        %p620 = pneg %p281
        %p621 = pneg %p305
        %p622 = pneg %p302
        %p623 = pneg %p326
        %p624 = pneg %p323
        %p625 = pneg %p347
        %p626 = pneg %p344
        %p627 = pneg %p368
        %p628 = pneg %p365
        %p629 = pneg %p389
        %p630 = pneg %p386
        %p631 = pneg %p417
        %p632 = pneg %p414
        %s633 = sand.u32 %s404, 1
        %s634 = scalar_lea.sflag [#allocation5], %s633
        %s635 = sand.u32 %s404, 1
        %s636 = smul.addr %s635, 8
        %s637 = scalar_lea.vmem [#allocation14], %s636
        %p638 = scmp.lt.s32.totalorder %s40, 1
        %s639 = scalar_select %p638, %s40, 1
        %s640 = scalar_lea.vmem %s1, %s639
        %p641 = scmp.eq.s32.totalorder %s41, 0
        // Predicated region
        $region109: #{tpu_custom_call.1} parent=83 // pred_check
          %p642 = pneg %p641
        $region110: #{tpu_custom_call.1} parent=83 // pred_check_branch
          %644 = sbr.rel (%p642) target = $region112
        $region111: #{tpu_custom_call.1} parent=83 // pred_region
          %v645 = vld [vmem:[%s566] sm:$0xff]
          %v646 = vld [vmem:[%s566 + $0x8] sm:$0xff]
          %v647 = vld [vmem:[#allocation8] sm:$0xff]
          %v648 = vld [vmem:[#allocation8 + $0x8] sm:$0xff]
          %v649 = vld [vmem:[#allocation8 + $0x10] sm:$0xff]
          %v650 = vld [vmem:[#allocation8 + $0x18] sm:$0xff]
          %v651 = vld [vmem:[#allocation8 + $0x20] sm:$0xff]
          %v652 = vld [vmem:[#allocation8 + $0x28] sm:$0xff]
          %v653 = vld [vmem:[#allocation8 + $0x30] sm:$0xff]
          %v654 = vld [vmem:[#allocation8 + $0x38] sm:$0xff]
          %v655 = vld [vmem:[#allocation8 + $0x40] sm:$0xff]
          %v656 = vld [vmem:[#allocation8 + $0x48] sm:$0xff]
          %v657 = vld [vmem:[#allocation8 + $0x50] sm:$0xff]
          %v658 = vld [vmem:[#allocation8 + $0x58] sm:$0xff]
          %v659 = vld [vmem:[#allocation8 + $0x60] sm:$0xff]
          %v660 = vld [vmem:[#allocation8 + $0x68] sm:$0xff]
          %v661 = vld [vmem:[#allocation8 + $0x70] sm:$0xff]
          %v662 = vld [vmem:[#allocation8 + $0x78] sm:$0xff]
          %v663 = vld [vmem:[#allocation8 + $0x80] sm:$0xff]
          %v664 = vld [vmem:[#allocation8 + $0x88] sm:$0xff]
          %v665 = vld [vmem:[#allocation8 + $0x90] sm:$0xff]
          %v666 = vld [vmem:[#allocation8 + $0x98] sm:$0xff]
          %v667 = vld [vmem:[#allocation8 + $0xa0] sm:$0xff]
          %v668 = vld [vmem:[#allocation8 + $0xa8] sm:$0xff]
          %v669 = vld [vmem:[#allocation8 + $0xb0] sm:$0xff]
          %v670 = vld [vmem:[#allocation8 + $0xb8] sm:$0xff]
          %v671 = vld [vmem:[#allocation8 + $0xc0] sm:$0xff]
          %v672 = vld [vmem:[#allocation8 + $0xc8] sm:$0xff]
          %v673 = vld [vmem:[#allocation8 + $0xd0] sm:$0xff]
          %v674 = vld [vmem:[#allocation8 + $0xd8] sm:$0xff]
          %v675 = vld [vmem:[#allocation8 + $0xe0] sm:$0xff]
          %v676 = vld [vmem:[#allocation8 + $0xe8] sm:$0xff]
          %v677 = vld [vmem:[#allocation8 + $0xf0] sm:$0xff]
          %v678 = vld [vmem:[#allocation8 + $0xf8] sm:$0xff]
          %v679 = vld [vmem:[%s5] sm:$0x3]
          %v681 = vlaneseq
          %v682 = vshrl.u32 %v681, 7
          %v683 = vsub.s32 0, %v682
          %v684 = vrot.slane %v679, %v683
          %v685 = vlaneseq
          %v686 = vshrl.u32 %v685, 7
          %v687 = vsub.s32 1, %v686
          %v688 = vrot.slane %v679, %v687
          %691 = vmatprep.subr.mxu0 %v648
          %692 = vmatpush1.msra.mxu0 %v647
          %693 = vmatprep.subr.mxu0 %v650
          %694 = vmatpush1.msra.mxu0 %v649
          %695 = vmatprep.subr.mxu0 %v652
          %696 = vmatpush1.msra.mxu0 %v651
          %697 = vmatprep.subr.mxu0 %v654
          %698 = vmatpush1.msra.mxu0 %v653
          %699 = vmatprep.subr.mxu0 %v656
          %700 = vmatpush1.msra.mxu0 %v655
          %701 = vmatprep.subr.mxu0 %v658
          %702 = vmatpush1.msra.mxu0 %v657
          %703 = vmatprep.subr.mxu0 %v660
          %704 = vmatpush1.msra.mxu0 %v659
          %705 = vmatprep.subr.mxu0 %v662
          %706 = vmatpush1.msra.mxu0 %v661
          %707 = vmatprep.subr.mxu0 %v664
          %708 = vmatpush1.msra.mxu0 %v663
          %709 = vmatprep.subr.mxu0 %v666
          %710 = vmatpush1.msra.mxu0 %v665
          %711 = vmatprep.subr.mxu0 %v668
          %712 = vmatpush1.msra.mxu0 %v667
          %713 = vmatprep.subr.mxu0 %v670
          %714 = vmatpush1.msra.mxu0 %v669
          %715 = vmatprep.subr.mxu0 %v672
          %716 = vmatpush1.msra.mxu0 %v671
          %717 = vmatprep.subr.mxu0 %v674
          %718 = vmatpush1.msra.mxu0 %v673
          %719 = vmatprep.subr.mxu0 %v676
          %720 = vmatpush1.msra.mxu0 %v675
          %721 = vmatprep.subr.mxu0 %v678
          %722 = vmatpush1.msra.mxu0 %v677
          %723 = vmatprep.subr.mxu0 0.0
          %724 = vmatpush1.msra.mxu0 0.0
          %725 = vmatprep.subr.mxu0 0.0
          %726 = vmatpush1.msra.mxu0 0.0
          %727 = vmatprep.subr.mxu0 0.0
          %728 = vmatpush1.msra.mxu0 0.0
          %729 = vmatprep.subr.mxu0 0.0
          %730 = vmatpush1.msra.mxu0 0.0
          %731 = vmatprep.subr.mxu0 0.0
          %732 = vmatpush1.msra.mxu0 0.0
          %733 = vmatprep.subr.mxu0 0.0
          %734 = vmatpush1.msra.mxu0 0.0
          %735 = vmatprep.subr.mxu0 0.0
          %736 = vmatpush1.msra.mxu0 0.0
          %737 = vmatprep.subr.mxu0 0.0
          %738 = vmatpush1.msra.mxu0 0.0
          %739 = vmatprep.subr.mxu0 0.0
          %740 = vmatpush1.msra.mxu0 0.0
          %741 = vmatprep.subr.mxu0 0.0
          %742 = vmatpush1.msra.mxu0 0.0
          %743 = vmatprep.subr.mxu0 0.0
          %744 = vmatpush1.msra.mxu0 0.0
          %745 = vmatprep.subr.mxu0 0.0
          %746 = vmatpush1.msra.mxu0 0.0
          %747 = vmatprep.subr.mxu0 0.0
          %748 = vmatpush1.msra.mxu0 0.0
          %749 = vmatprep.subr.mxu0 0.0
          %750 = vmatpush1.msra.mxu0 0.0
          %751 = vmatprep.subr.mxu0 0.0
          %752 = vmatpush1.msra.mxu0 0.0
          %753 = vmatprep.subr.mxu0 0.0
          %754 = vmatpush1.msra.mxu0 0.0
          %755 = vmatprep.mubr.f32.mxu0 0.0
          %756 = vmatmul.mubr.f32.gmra.mrb[0].mxu0 %v645
          %v757 = vpop.f32.mrb[0].mxu0
          %v758 = vadd.f32 %v684, %v757
          %v759 = vpop.f32.mrb[0].mxu0
          %v760 = vadd.f32 %v688, %v759
          %761 = vmatprep.mubr.f32.mxu0 0.0
          %762 = vmatmul.mubr.f32.gmra.mrb[0].mxu0 %v646
          %v763 = vpop.f32.mrb[0].mxu0
          %v764 = vadd.f32 %v684, %v763
          %v765 = vpop.f32.mrb[0].mxu0
          %v766 = vadd.f32 %v688, %v765
          %767 = vdwg.mxu0
          %768 = vst [vmem:[#allocation2] sm:$0xff] %v758
          %769 = vst [vmem:[#allocation2 + $0x8] sm:$0xff] %v760
          %770 = vst [vmem:[#allocation2 + $0x10] sm:$0xff] %v764
          %771 = vst [vmem:[#allocation2 + $0x18] sm:$0xff] %v766
        $region112: #{tpu_custom_call.1} parent=83 // pred_fallthru
          _
        %s772 = smul.u32 %s41, 8
        %s773 = scalar_lea.vmem %s566, %s772 [#allocation3]
        %v774 = vld [vmem:[%s773] sm:$0xff]
        %v775 = vld [vmem:[%s640] sm:$0x1]
        %v776 = vsub.f32 1.0, %v775
        %v777 = vmul.f32 %v776, -10000.0
        %v778 = vld [vmem:[#allocation6] sm:$0xff]
        %v779 = vld [vmem:[#allocation6 + $0x8] sm:$0xff]
        %v780 = vld [vmem:[#allocation6 + $0x10] sm:$0xff]
        %v781 = vld [vmem:[#allocation6 + $0x18] sm:$0xff]
        %v782 = vld [vmem:[#allocation6 + $0x20] sm:$0xff]
        %v783 = vld [vmem:[#allocation6 + $0x28] sm:$0xff]
        %v784 = vld [vmem:[#allocation6 + $0x30] sm:$0xff]
        %v785 = vld [vmem:[#allocation6 + $0x38] sm:$0xff]
        %v786 = vld [vmem:[#allocation6 + $0x40] sm:$0xff]
        %v787 = vld [vmem:[#allocation6 + $0x48] sm:$0xff]
        %v788 = vld [vmem:[#allocation6 + $0x50] sm:$0xff]
        %v789 = vld [vmem:[#allocation6 + $0x58] sm:$0xff]
        %v790 = vld [vmem:[#allocation6 + $0x60] sm:$0xff]
        %v791 = vld [vmem:[#allocation6 + $0x68] sm:$0xff]
        %v792 = vld [vmem:[#allocation6 + $0x70] sm:$0xff]
        %v793 = vld [vmem:[#allocation6 + $0x78] sm:$0xff]
        %v794 = vld [vmem:[%s3] sm:$0x1]
        %v796 = vlaneseq
        %v797 = vshrl.u32 %v796, 7
        %v798 = vsub.s32 0, %v797
        %v799 = vrot.slane %v794, %v798
        %801 = vmatprep.subr.mxu0 0.0
        %802 = vmatpush1.msra.mxu0 %v778
        %803 = vmatprep.subr.mxu0 0.0
        %804 = vmatpush1.msra.mxu0 %v779
        %805 = vmatprep.subr.mxu0 0.0
        %806 = vmatpush1.msra.mxu0 %v780
        %807 = vmatprep.subr.mxu0 0.0
        %808 = vmatpush1.msra.mxu0 %v781
        %809 = vmatprep.subr.mxu0 0.0
        %810 = vmatpush1.msra.mxu0 %v782
        %811 = vmatprep.subr.mxu0 0.0
        %812 = vmatpush1.msra.mxu0 %v783
        %813 = vmatprep.subr.mxu0 0.0
        %814 = vmatpush1.msra.mxu0 %v784
        %815 = vmatprep.subr.mxu0 0.0
        %816 = vmatpush1.msra.mxu0 %v785
        %817 = vmatprep.subr.mxu0 0.0
        %818 = vmatpush1.msra.mxu0 %v786
        %819 = vmatprep.subr.mxu0 0.0
        %820 = vmatpush1.msra.mxu0 %v787
        %821 = vmatprep.subr.mxu0 0.0
        %822 = vmatpush1.msra.mxu0 %v788
        %823 = vmatprep.subr.mxu0 0.0
        %824 = vmatpush1.msra.mxu0 %v789
        %825 = vmatprep.subr.mxu0 0.0
        %826 = vmatpush1.msra.mxu0 %v790
        %827 = vmatprep.subr.mxu0 0.0
        %828 = vmatpush1.msra.mxu0 %v791
        %829 = vmatprep.subr.mxu0 0.0
        %830 = vmatpush1.msra.mxu0 %v792
        %831 = vmatprep.subr.mxu0 0.0
        %832 = vmatpush1.msra.mxu0 %v793
        %833 = vmatprep.subr.mxu0 0.0
        %834 = vmatpush1.msra.mxu0 0.0
        %835 = vmatprep.subr.mxu0 0.0
        %836 = vmatpush1.msra.mxu0 0.0
        %837 = vmatprep.subr.mxu0 0.0
        %838 = vmatpush1.msra.mxu0 0.0
        %839 = vmatprep.subr.mxu0 0.0
        %840 = vmatpush1.msra.mxu0 0.0
        %841 = vmatprep.subr.mxu0 0.0
        %842 = vmatpush1.msra.mxu0 0.0
        %843 = vmatprep.subr.mxu0 0.0
        %844 = vmatpush1.msra.mxu0 0.0
        %845 = vmatprep.subr.mxu0 0.0
        %846 = vmatpush1.msra.mxu0 0.0
        %847 = vmatprep.subr.mxu0 0.0
        %848 = vmatpush1.msra.mxu0 0.0
        %849 = vmatprep.subr.mxu0 0.0
        %850 = vmatpush1.msra.mxu0 0.0
        %851 = vmatprep.subr.mxu0 0.0
        %852 = vmatpush1.msra.mxu0 0.0
        %853 = vmatprep.subr.mxu0 0.0
        %854 = vmatpush1.msra.mxu0 0.0
        %855 = vmatprep.subr.mxu0 0.0
        %856 = vmatpush1.msra.mxu0 0.0
        %857 = vmatprep.subr.mxu0 0.0
        %858 = vmatpush1.msra.mxu0 0.0
        %859 = vmatprep.subr.mxu0 0.0
        %860 = vmatpush1.msra.mxu0 0.0
        %861 = vmatprep.subr.mxu0 0.0
        %862 = vmatpush1.msra.mxu0 0.0
        %863 = vmatprep.subr.mxu0 0.0
        %864 = vmatpush1.msra.mxu0 0.0
        %865 = vmatprep.mubr.f32.mxu0 0.0
        %866 = vmatmul.mubr.f32.gmra.mrb[0].mxu0 %v774
        %v867 = vpop.f32.mrb[0].mxu0
        %v868 = vadd.f32 %v799, %v867
        %v869 = vpop.f32.mrb[0].mxu0
        %870 = vdwg.mxu0
        %v871 = vld [vmem:[#allocation2] sm:$0xff]
        %v872 = vld [vmem:[#allocation2 + $0x10] sm:$0xff]
        %v873 = vld [vmem:[#allocation2 + $0x8] sm:$0xff]
        %v874 = vld [vmem:[#allocation2 + $0x18] sm:$0xff]
        %vm875 = vcmask 261120
        %v877 = vsel %vm875, %v868, 0
        %v880 = vsel %vm875, %v871, 0
        %v883 = vsel %vm875, %v872, 0
        %885 = vmatprep.subr.mxu0 0.0
        %886 = vmatpush1.xpose.msra.mxu0 %v880
        %887 = vmatprep.subr.mxu0 0.0
        %888 = vmatpush1.xpose.msra.mxu0 %v883
        %889 = vmatprep.subr.mxu0 0.0
        %890 = vmatpush1.xpose.msra.mxu0 0.0
        %891 = vmatprep.subr.mxu0 0.0
        %892 = vmatpush1.xpose.msra.mxu0 0.0
        %893 = vmatprep.subr.mxu0 0.0
        %894 = vmatpush1.xpose.msra.mxu0 0.0
        %895 = vmatprep.subr.mxu0 0.0
        %896 = vmatpush1.xpose.msra.mxu0 0.0
        %897 = vmatprep.subr.mxu0 0.0
        %898 = vmatpush1.xpose.msra.mxu0 0.0
        %899 = vmatprep.subr.mxu0 0.0
        %900 = vmatpush1.xpose.msra.mxu0 0.0
        %901 = vmatprep.subr.mxu0 0.0
        %902 = vmatpush1.xpose.msra.mxu0 0.0
        %903 = vmatprep.subr.mxu0 0.0
        %904 = vmatpush1.xpose.msra.mxu0 0.0
        %905 = vmatprep.subr.mxu0 0.0
        %906 = vmatpush1.xpose.msra.mxu0 0.0
        %907 = vmatprep.subr.mxu0 0.0
        %908 = vmatpush1.xpose.msra.mxu0 0.0
        %909 = vmatprep.subr.mxu0 0.0
        %910 = vmatpush1.xpose.msra.mxu0 0.0
        %911 = vmatprep.subr.mxu0 0.0
        %912 = vmatpush1.xpose.msra.mxu0 0.0
        %913 = vmatprep.subr.mxu0 0.0
        %914 = vmatpush1.xpose.msra.mxu0 0.0
        %915 = vmatprep.subr.mxu0 0.0
        %916 = vmatpush1.xpose.msra.mxu0 0.0
        %917 = vmatprep.subr.mxu0 0.0
        %918 = vmatpush1.xpose.msra.mxu0 0.0
        %919 = vmatprep.subr.mxu0 0.0
        %920 = vmatpush1.xpose.msra.mxu0 0.0
        %921 = vmatprep.subr.mxu0 0.0
        %922 = vmatpush1.xpose.msra.mxu0 0.0
        %923 = vmatprep.subr.mxu0 0.0
        %924 = vmatpush1.xpose.msra.mxu0 0.0
        %925 = vmatprep.subr.mxu0 0.0
        %926 = vmatpush1.xpose.msra.mxu0 0.0
        %927 = vmatprep.subr.mxu0 0.0
        %928 = vmatpush1.xpose.msra.mxu0 0.0
        %929 = vmatprep.subr.mxu0 0.0
        %930 = vmatpush1.xpose.msra.mxu0 0.0
        %931 = vmatprep.subr.mxu0 0.0
        %932 = vmatpush1.xpose.msra.mxu0 0.0
        %933 = vmatprep.subr.mxu0 0.0
        %934 = vmatpush1.xpose.msra.mxu0 0.0
        %935 = vmatprep.subr.mxu0 0.0
        %936 = vmatpush1.xpose.msra.mxu0 0.0
        %937 = vmatprep.subr.mxu0 0.0
        %938 = vmatpush1.xpose.msra.mxu0 0.0
        %939 = vmatprep.subr.mxu0 0.0
        %940 = vmatpush1.xpose.msra.mxu0 0.0
        %941 = vmatprep.subr.mxu0 0.0
        %942 = vmatpush1.xpose.msra.mxu0 0.0
        %943 = vmatprep.subr.mxu0 0.0
        %944 = vmatpush1.xpose.msra.mxu0 0.0
        %945 = vmatprep.subr.mxu0 0.0
        %946 = vmatpush1.xpose.msra.mxu0 0.0
        %947 = vmatprep.subr.mxu0 0.0
        %948 = vmatpush1.xpose.msra.mxu0 0.0
        %949 = vmatprep.mubr.f32.mxu0 0.0
        %950 = vmatmul.mubr.f32.gmra.mrb[0].mxu0 %v877
        %v951 = vpop.f32.mrb[0].mxu0
        %v952 = vadd.f32 0.0, %v951
        %v953 = vpop.f32.mrb[0].mxu0
        %954 = vdwg.mxu0
        %v955 = vmul.f32 %v952, 0.17677669
        %v957 = vlaneseq
        %v958 = vshrl.u32 %v957, 7
        %v959 = vsub.s32 0, %v958
        %v960 = vrot.slane %v777, %v959
        %v962 = vadd.f32 %v955, %v960
        %vm963 = vcmask 130048
        %v964 = vsel %vm963, %v962, -inf
        %965 = vmax.xlane.f32.xlu0 %v964
        %v966 = vpop.xlane.xlu0 %965
        %v967 = vsub.f32 %v962, %v966
        %v968 = vmul.f32 %v967, 1.442695
        %v969 = vpow.pop %v968
        %v970 = vsel %vm963, %v969, 0.0
        %971 = vadd.xlane.f32.xlu0 %v970
        %v972 = vpop.xlane.xlu0 %971
        %v973 = vrcp.pop %v972
        %v974 = vmul.f32 %v969, %v973
        %v976 = vsel %vm963, %v974, 0
        %978 = vmatprep.subr.mxu0 0.0
        %979 = vmatpush1.msra.mxu0 %v873
        %980 = vmatprep.subr.mxu0 0.0
        %981 = vmatpush1.msra.mxu0 %v874
        %982 = vmatprep.subr.mxu0 0.0
        %983 = vmatpush1.msra.mxu0 0.0
        %984 = vmatprep.subr.mxu0 0.0
        %985 = vmatpush1.msra.mxu0 0.0
        %986 = vmatprep.subr.mxu0 0.0
        %987 = vmatpush1.msra.mxu0 0.0
        %988 = vmatprep.subr.mxu0 0.0
        %989 = vmatpush1.msra.mxu0 0.0
        %990 = vmatprep.subr.mxu0 0.0
        %991 = vmatpush1.msra.mxu0 0.0
        %992 = vmatprep.subr.mxu0 0.0
        %993 = vmatpush1.msra.mxu0 0.0
        %994 = vmatprep.subr.mxu0 0.0
        %995 = vmatpush1.msra.mxu0 0.0
        %996 = vmatprep.subr.mxu0 0.0
        %997 = vmatpush1.msra.mxu0 0.0
        %998 = vmatprep.subr.mxu0 0.0
        %999 = vmatpush1.msra.mxu0 0.0
        %1000 = vmatprep.subr.mxu0 0.0
        %1001 = vmatpush1.msra.mxu0 0.0
        %1002 = vmatprep.subr.mxu0 0.0
        %1003 = vmatpush1.msra.mxu0 0.0
        %1004 = vmatprep.subr.mxu0 0.0
        %1005 = vmatpush1.msra.mxu0 0.0
        %1006 = vmatprep.subr.mxu0 0.0
        %1007 = vmatpush1.msra.mxu0 0.0
        %1008 = vmatprep.subr.mxu0 0.0
        %1009 = vmatpush1.msra.mxu0 0.0
        %1010 = vmatprep.subr.mxu0 0.0
        %1011 = vmatpush1.msra.mxu0 0.0
        %1012 = vmatprep.subr.mxu0 0.0
        %1013 = vmatpush1.msra.mxu0 0.0
        %1014 = vmatprep.subr.mxu0 0.0
        %1015 = vmatpush1.msra.mxu0 0.0
        %1016 = vmatprep.subr.mxu0 0.0
        %1017 = vmatpush1.msra.mxu0 0.0
        %1018 = vmatprep.subr.mxu0 0.0
        %1019 = vmatpush1.msra.mxu0 0.0
        %1020 = vmatprep.subr.mxu0 0.0
        %1021 = vmatpush1.msra.mxu0 0.0
        %1022 = vmatprep.subr.mxu0 0.0
        %1023 = vmatpush1.msra.mxu0 0.0
        %1024 = vmatprep.subr.mxu0 0.0
        %1025 = vmatpush1.msra.mxu0 0.0
        %1026 = vmatprep.subr.mxu0 0.0
        %1027 = vmatpush1.msra.mxu0 0.0
        %1028 = vmatprep.subr.mxu0 0.0
        %1029 = vmatpush1.msra.mxu0 0.0
        %1030 = vmatprep.subr.mxu0 0.0
        %1031 = vmatpush1.msra.mxu0 0.0
        %1032 = vmatprep.subr.mxu0 0.0
        %1033 = vmatpush1.msra.mxu0 0.0
        %1034 = vmatprep.subr.mxu0 0.0
        %1035 = vmatpush1.msra.mxu0 0.0
        %1036 = vmatprep.subr.mxu0 0.0
        %1037 = vmatpush1.msra.mxu0 0.0
        %1038 = vmatprep.subr.mxu0 0.0
        %1039 = vmatpush1.msra.mxu0 0.0
        %1040 = vmatprep.subr.mxu0 0.0
        %1041 = vmatpush1.msra.mxu0 0.0
        %1042 = vmatprep.mubr.f32.mxu0 0.0
        %1043 = vmatmul.mubr.f32.gmra.mrb[0].mxu0 %v976
        %v1044 = vpop.f32.mrb[0].mxu0
        %v1045 = vadd.f32 0.0, %v1044
        %v1046 = vpop.f32.mrb[0].mxu0
        %1047 = vdwg.mxu0
        %v1048 = vld [vmem:[#allocation9] sm:$0xff]
        %v1049 = vld [vmem:[#allocation9 + $0x8] sm:$0xff]
        %v1050 = vld [vmem:[#allocation9 + $0x10] sm:$0xff]
        %v1051 = vld [vmem:[#allocation9 + $0x18] sm:$0xff]
        %1052 = vrot.lane.b32.xlu0 %v868, 96
        %v1053 = vpop.permute.xlu0 %1052
        %1054 = vrot.lane.b32.xlu0 %v871, 96
        %v1055 = vpop.permute.xlu0 %1054
        %1056 = vrot.lane.b32.xlu0 %v872, 96
        %v1057 = vpop.permute.xlu0 %1056
        %v1058 = vsel %vm875, %v1053, 0
        %v1060 = vsel %vm875, %v1055, 0
        %v1062 = vsel %vm875, %v1057, 0
        %1064 = vmatprep.subr.mxu0 0.0
        %1065 = vmatpush1.xpose.msra.mxu0 %v1060
        %1066 = vmatprep.subr.mxu0 0.0
        %1067 = vmatpush1.xpose.msra.mxu0 %v1062
        %1068 = vmatprep.subr.mxu0 0.0
        %1069 = vmatpush1.xpose.msra.mxu0 0.0
        %1070 = vmatprep.subr.mxu0 0.0
        %1071 = vmatpush1.xpose.msra.mxu0 0.0
        %1072 = vmatprep.subr.mxu0 0.0
        %1073 = vmatpush1.xpose.msra.mxu0 0.0
        %1074 = vmatprep.subr.mxu0 0.0
        %1075 = vmatpush1.xpose.msra.mxu0 0.0
        %1076 = vmatprep.subr.mxu0 0.0
        %1077 = vmatpush1.xpose.msra.mxu0 0.0
        %1078 = vmatprep.subr.mxu0 0.0
        %1079 = vmatpush1.xpose.msra.mxu0 0.0
        %1080 = vmatprep.subr.mxu0 0.0
        %1081 = vmatpush1.xpose.msra.mxu0 0.0
        %1082 = vmatprep.subr.mxu0 0.0
        %1083 = vmatpush1.xpose.msra.mxu0 0.0
        %1084 = vmatprep.subr.mxu0 0.0
        %1085 = vmatpush1.xpose.msra.mxu0 0.0
        %1086 = vmatprep.subr.mxu0 0.0
        %1087 = vmatpush1.xpose.msra.mxu0 0.0
        %1088 = vmatprep.subr.mxu0 0.0
        %1089 = vmatpush1.xpose.msra.mxu0 0.0
        %1090 = vmatprep.subr.mxu0 0.0
        %1091 = vmatpush1.xpose.msra.mxu0 0.0
        %1092 = vmatprep.subr.mxu0 0.0
        %1093 = vmatpush1.xpose.msra.mxu0 0.0
        %1094 = vmatprep.subr.mxu0 0.0
        %1095 = vmatpush1.xpose.msra.mxu0 0.0
        %1096 = vmatprep.subr.mxu0 0.0
        %1097 = vmatpush1.xpose.msra.mxu0 0.0
        %1098 = vmatprep.subr.mxu0 0.0
        %1099 = vmatpush1.xpose.msra.mxu0 0.0
        %1100 = vmatprep.subr.mxu0 0.0
        %1101 = vmatpush1.xpose.msra.mxu0 0.0
        %1102 = vmatprep.subr.mxu0 0.0
        %1103 = vmatpush1.xpose.msra.mxu0 0.0
        %1104 = vmatprep.subr.mxu0 0.0
        %1105 = vmatpush1.xpose.msra.mxu0 0.0
        %1106 = vmatprep.subr.mxu0 0.0
        %1107 = vmatpush1.xpose.msra.mxu0 0.0
        %1108 = vmatprep.subr.mxu0 0.0
        %1109 = vmatpush1.xpose.msra.mxu0 0.0
        %1110 = vmatprep.subr.mxu0 0.0
        %1111 = vmatpush1.xpose.msra.mxu0 0.0
        %1112 = vmatprep.subr.mxu0 0.0
        %1113 = vmatpush1.xpose.msra.mxu0 0.0
        %1114 = vmatprep.subr.mxu0 0.0
        %1115 = vmatpush1.xpose.msra.mxu0 0.0
        %1116 = vmatprep.subr.mxu0 0.0
        %1117 = vmatpush1.xpose.msra.mxu0 0.0
        %1118 = vmatprep.subr.mxu0 0.0
        %1119 = vmatpush1.xpose.msra.mxu0 0.0
        %1120 = vmatprep.subr.mxu0 0.0
        %1121 = vmatpush1.xpose.msra.mxu0 0.0
        %1122 = vmatprep.subr.mxu0 0.0
        %1123 = vmatpush1.xpose.msra.mxu0 0.0
        %1124 = vmatprep.subr.mxu0 0.0
        %1125 = vmatpush1.xpose.msra.mxu0 0.0
        %1126 = vmatprep.subr.mxu0 0.0
        %1127 = vmatpush1.xpose.msra.mxu0 0.0
        %1128 = vmatprep.mubr.f32.mxu0 0.0
        %1129 = vmatmul.mubr.f32.gmra.mrb[0].mxu0 %v1058
        %v1130 = vpop.f32.mrb[0].mxu0
        %v1131 = vadd.f32 0.0, %v1130
        %v1132 = vpop.f32.mrb[0].mxu0
        %1133 = vdwg.mxu0
        %v1134 = vmul.f32 %v1131, 0.17677669
        %v1135 = vadd.f32 %v1134, %v960
        %v1136 = vsel %vm963, %v1135, -inf
        %1137 = vmax.xlane.f32.xlu0 %v1136
        %v1138 = vpop.xlane.xlu0 %1137
        %v1139 = vsub.f32 %v1135, %v1138
        %v1140 = vmul.f32 %v1139, 1.442695
        %v1141 = vpow.pop %v1140
        %v1142 = vsel %vm963, %v1141, 0.0
        %1143 = vadd.xlane.f32.xlu0 %v1142
        %v1144 = vpop.xlane.xlu0 %1143
        %v1145 = vrcp.pop %v1144
        %v1146 = vmul.f32 %v1141, %v1145
        %1149 = vrot.lane.b32.xlu0 %v873, 96
        %v1150 = vpop.permute.xlu0 %1149
        %1151 = vrot.lane.b32.xlu0 %v874, 96
        %v1152 = vpop.permute.xlu0 %1151
        %v1156 = vsel %vm963, %v1146, 0
        %1158 = vmatprep.subr.mxu0 0.0
        %1159 = vmatpush1.msra.mxu0 %v1150
        %1160 = vmatprep.subr.mxu0 0.0
        %1161 = vmatpush1.msra.mxu0 %v1152
        %1162 = vmatprep.subr.mxu0 0.0
        %1163 = vmatpush1.msra.mxu0 0.0
        %1164 = vmatprep.subr.mxu0 0.0
        %1165 = vmatpush1.msra.mxu0 0.0
        %1166 = vmatprep.subr.mxu0 0.0
        %1167 = vmatpush1.msra.mxu0 0.0
        %1168 = vmatprep.subr.mxu0 0.0
        %1169 = vmatpush1.msra.mxu0 0.0
        %1170 = vmatprep.subr.mxu0 0.0
        %1171 = vmatpush1.msra.mxu0 0.0
        %1172 = vmatprep.subr.mxu0 0.0
        %1173 = vmatpush1.msra.mxu0 0.0
        %1174 = vmatprep.subr.mxu0 0.0
        %1175 = vmatpush1.msra.mxu0 0.0
        %1176 = vmatprep.subr.mxu0 0.0
        %1177 = vmatpush1.msra.mxu0 0.0
        %1178 = vmatprep.subr.mxu0 0.0
        %1179 = vmatpush1.msra.mxu0 0.0
        %1180 = vmatprep.subr.mxu0 0.0
        %1181 = vmatpush1.msra.mxu0 0.0
        %1182 = vmatprep.subr.mxu0 0.0
        %1183 = vmatpush1.msra.mxu0 0.0
        %1184 = vmatprep.subr.mxu0 0.0
        %1185 = vmatpush1.msra.mxu0 0.0
        %1186 = vmatprep.subr.mxu0 0.0
        %1187 = vmatpush1.msra.mxu0 0.0
        %1188 = vmatprep.subr.mxu0 0.0
        %1189 = vmatpush1.msra.mxu0 0.0
        %1190 = vmatprep.subr.mxu0 0.0
        %1191 = vmatpush1.msra.mxu0 0.0
        %1192 = vmatprep.subr.mxu0 0.0
        %1193 = vmatpush1.msra.mxu0 0.0
        %1194 = vmatprep.subr.mxu0 0.0
        %1195 = vmatpush1.msra.mxu0 0.0
        %1196 = vmatprep.subr.mxu0 0.0
        %1197 = vmatpush1.msra.mxu0 0.0
        %1198 = vmatprep.subr.mxu0 0.0
        %1199 = vmatpush1.msra.mxu0 0.0
        %1200 = vmatprep.subr.mxu0 0.0
        %1201 = vmatpush1.msra.mxu0 0.0
        %1202 = vmatprep.subr.mxu0 0.0
        %1203 = vmatpush1.msra.mxu0 0.0
        %1204 = vmatprep.subr.mxu0 0.0
        %1205 = vmatpush1.msra.mxu0 0.0
        %1206 = vmatprep.subr.mxu0 0.0
        %1207 = vmatpush1.msra.mxu0 0.0
        %1208 = vmatprep.subr.mxu0 0.0
        %1209 = vmatpush1.msra.mxu0 0.0
        %1210 = vmatprep.subr.mxu0 0.0
        %1211 = vmatpush1.msra.mxu0 0.0
        %1212 = vmatprep.subr.mxu0 0.0
        %1213 = vmatpush1.msra.mxu0 0.0
        %1214 = vmatprep.subr.mxu0 0.0
        %1215 = vmatpush1.msra.mxu0 0.0
        %1216 = vmatprep.subr.mxu0 0.0
        %1217 = vmatpush1.msra.mxu0 0.0
        %1218 = vmatprep.subr.mxu0 0.0
        %1219 = vmatpush1.msra.mxu0 0.0
        %1220 = vmatprep.subr.mxu0 0.0
        %1221 = vmatpush1.msra.mxu0 0.0
        %1222 = vmatprep.mubr.f32.mxu0 0.0
        %1223 = vmatmul.mubr.f32.gmra.mrb[0].mxu0 %v1156
        %v1224 = vpop.f32.mrb[0].mxu0
        %v1225 = vadd.f32 0.0, %v1224
        %v1226 = vpop.f32.mrb[0].mxu0
        %1227 = vdwg.mxu0
        %v1228 = vld [vmem:[#allocation9 + $0x20] sm:$0xff]
        %v1229 = vld [vmem:[#allocation9 + $0x28] sm:$0xff]
        %v1230 = vld [vmem:[#allocation9 + $0x30] sm:$0xff]
        %v1231 = vld [vmem:[#allocation9 + $0x38] sm:$0xff]
        %v1233 = vsel %vm875, %v1225, 0
        %1235 = vmatprep.subr.mxu0 0.0
        %1236 = vmatpush1.msra.mxu0 %v1228
        %1237 = vmatprep.subr.mxu0 0.0
        %1238 = vmatpush1.msra.mxu0 %v1229
        %1239 = vmatprep.subr.mxu0 0.0
        %1240 = vmatpush1.msra.mxu0 %v1230
        %1241 = vmatprep.subr.mxu0 0.0
        %1242 = vmatpush1.msra.mxu0 %v1231
        %1243 = vmatprep.subr.mxu0 0.0
        %1244 = vmatpush1.msra.mxu0 0.0
        %1245 = vmatprep.subr.mxu0 0.0
        %1246 = vmatpush1.msra.mxu0 0.0
        %1247 = vmatprep.subr.mxu0 0.0
        %1248 = vmatpush1.msra.mxu0 0.0
        %1249 = vmatprep.subr.mxu0 0.0
        %1250 = vmatpush1.msra.mxu0 0.0
        %1251 = vmatprep.subr.mxu0 0.0
        %1252 = vmatpush1.msra.mxu0 0.0
        %1253 = vmatprep.subr.mxu0 0.0
        %1254 = vmatpush1.msra.mxu0 0.0
        %1255 = vmatprep.subr.mxu0 0.0
        %1256 = vmatpush1.msra.mxu0 0.0
        %1257 = vmatprep.subr.mxu0 0.0
        %1258 = vmatpush1.msra.mxu0 0.0
        %1259 = vmatprep.subr.mxu0 0.0
        %1260 = vmatpush1.msra.mxu0 0.0
        %1261 = vmatprep.subr.mxu0 0.0
        %1262 = vmatpush1.msra.mxu0 0.0
        %1263 = vmatprep.subr.mxu0 0.0
        %1264 = vmatpush1.msra.mxu0 0.0
        %1265 = vmatprep.subr.mxu0 0.0
        %1266 = vmatpush1.msra.mxu0 0.0
        %1267 = vmatprep.subr.mxu0 0.0
        %1268 = vmatpush1.msra.mxu0 0.0
        %1269 = vmatprep.subr.mxu0 0.0
        %1270 = vmatpush1.msra.mxu0 0.0
        %1271 = vmatprep.subr.mxu0 0.0
        %1272 = vmatpush1.msra.mxu0 0.0
        %1273 = vmatprep.subr.mxu0 0.0
        %1274 = vmatpush1.msra.mxu0 0.0
        %1275 = vmatprep.subr.mxu0 0.0
        %1276 = vmatpush1.msra.mxu0 0.0
        %1277 = vmatprep.subr.mxu0 0.0
        %1278 = vmatpush1.msra.mxu0 0.0
        %1279 = vmatprep.subr.mxu0 0.0
        %1280 = vmatpush1.msra.mxu0 0.0
        %1281 = vmatprep.subr.mxu0 0.0
        %1282 = vmatpush1.msra.mxu0 0.0
        %1283 = vmatprep.subr.mxu0 0.0
        %1284 = vmatpush1.msra.mxu0 0.0
        %1285 = vmatprep.subr.mxu0 0.0
        %1286 = vmatpush1.msra.mxu0 0.0
        %1287 = vmatprep.subr.mxu0 0.0
        %1288 = vmatpush1.msra.mxu0 0.0
        %1289 = vmatprep.subr.mxu0 0.0
        %1290 = vmatpush1.msra.mxu0 0.0
        %1291 = vmatprep.subr.mxu0 0.0
        %1292 = vmatpush1.msra.mxu0 0.0
        %1293 = vmatprep.subr.mxu0 0.0
        %1294 = vmatpush1.msra.mxu0 0.0
        %1295 = vmatprep.subr.mxu0 0.0
        %1296 = vmatpush1.msra.mxu0 0.0
        %1297 = vmatprep.subr.mxu0 0.0
        %1298 = vmatpush1.msra.mxu0 0.0
        %1299 = vmatprep.mubr.f32.mxu0 0.0
        %1300 = vmatmul.mubr.f32.gmra.mrb[0].mxu0 %v1233
        %v1301 = vpop.f32.mrb[0].mxu0
        %v1302 = vadd.f32 0.0, %v1301
        %v1303 = vpop.f32.mrb[0].mxu0
        %1304 = vdwg.mxu0
        %v1306 = vsel %vm875, %v1045, 0
        %1308 = vmatprep.subr.mxu0 0.0
        %1309 = vmatpush1.msra.mxu0 %v1048
        %1310 = vmatprep.subr.mxu0 0.0
        %1311 = vmatpush1.msra.mxu0 %v1049
        %1312 = vmatprep.subr.mxu0 0.0
        %1313 = vmatpush1.msra.mxu0 %v1050
        %1314 = vmatprep.subr.mxu0 0.0
        %1315 = vmatpush1.msra.mxu0 %v1051
        %1316 = vmatprep.subr.mxu0 0.0
        %1317 = vmatpush1.msra.mxu0 0.0
        %1318 = vmatprep.subr.mxu0 0.0
        %1319 = vmatpush1.msra.mxu0 0.0
        %1320 = vmatprep.subr.mxu0 0.0
        %1321 = vmatpush1.msra.mxu0 0.0
        %1322 = vmatprep.subr.mxu0 0.0
        %1323 = vmatpush1.msra.mxu0 0.0
        %1324 = vmatprep.subr.mxu0 0.0
        %1325 = vmatpush1.msra.mxu0 0.0
        %1326 = vmatprep.subr.mxu0 0.0
        %1327 = vmatpush1.msra.mxu0 0.0
        %1328 = vmatprep.subr.mxu0 0.0
        %1329 = vmatpush1.msra.mxu0 0.0
        %1330 = vmatprep.subr.mxu0 0.0
        %1331 = vmatpush1.msra.mxu0 0.0
        %1332 = vmatprep.subr.mxu0 0.0
        %1333 = vmatpush1.msra.mxu0 0.0
        %1334 = vmatprep.subr.mxu0 0.0
        %1335 = vmatpush1.msra.mxu0 0.0
        %1336 = vmatprep.subr.mxu0 0.0
        %1337 = vmatpush1.msra.mxu0 0.0
        %1338 = vmatprep.subr.mxu0 0.0
        %1339 = vmatpush1.msra.mxu0 0.0
        %1340 = vmatprep.subr.mxu0 0.0
        %1341 = vmatpush1.msra.mxu0 0.0
        %1342 = vmatprep.subr.mxu0 0.0
        %1343 = vmatpush1.msra.mxu0 0.0
        %1344 = vmatprep.subr.mxu0 0.0
        %1345 = vmatpush1.msra.mxu0 0.0
        %1346 = vmatprep.subr.mxu0 0.0
        %1347 = vmatpush1.msra.mxu0 0.0
        %1348 = vmatprep.subr.mxu0 0.0
        %1349 = vmatpush1.msra.mxu0 0.0
        %1350 = vmatprep.subr.mxu0 0.0
        %1351 = vmatpush1.msra.mxu0 0.0
        %1352 = vmatprep.subr.mxu0 0.0
        %1353 = vmatpush1.msra.mxu0 0.0
        %1354 = vmatprep.subr.mxu0 0.0
        %1355 = vmatpush1.msra.mxu0 0.0
        %1356 = vmatprep.subr.mxu0 0.0
        %1357 = vmatpush1.msra.mxu0 0.0
        %1358 = vmatprep.subr.mxu0 0.0
        %1359 = vmatpush1.msra.mxu0 0.0
        %1360 = vmatprep.subr.mxu0 0.0
        %1361 = vmatpush1.msra.mxu0 0.0
        %1362 = vmatprep.subr.mxu0 0.0
        %1363 = vmatpush1.msra.mxu0 0.0
        %1364 = vmatprep.subr.mxu0 0.0
        %1365 = vmatpush1.msra.mxu0 0.0
        %1366 = vmatprep.subr.mxu0 0.0
        %1367 = vmatpush1.msra.mxu0 0.0
        %1368 = vmatprep.subr.mxu0 0.0
        %1369 = vmatpush1.msra.mxu0 0.0
        %1370 = vmatprep.subr.mxu0 0.0
        %1371 = vmatpush1.msra.mxu0 0.0
        %1372 = vmatprep.mubr.f32.mxu0 0.0
        %1373 = vmatmul.mubr.f32.gmra.mrb[0].mxu0 %v1306
        %v1374 = vpop.f32.mrb[0].mxu0
        %v1375 = vadd.f32 %v1302, %v1374
        %v1376 = vpop.f32.mrb[0].mxu0
        %1377 = vdwg.mxu0
        %1378 = vrot.lane.b32.xlu0 %v868, 64
        %v1379 = vpop.permute.xlu0 %1378
        %1380 = vrot.lane.b32.xlu0 %v871, 64
        %v1381 = vpop.permute.xlu0 %1380
        %1382 = vrot.lane.b32.xlu0 %v872, 64
        %v1383 = vpop.permute.xlu0 %1382
        %v1384 = vsel %vm875, %v1379, 0
        %v1386 = vsel %vm875, %v1381, 0
        %v1388 = vsel %vm875, %v1383, 0
        %1390 = vmatprep.subr.mxu0 0.0
        %1391 = vmatpush1.xpose.msra.mxu0 %v1386
        %1392 = vmatprep.subr.mxu0 0.0
        %1393 = vmatpush1.xpose.msra.mxu0 %v1388
        %1394 = vmatprep.subr.mxu0 0.0
        %1395 = vmatpush1.xpose.msra.mxu0 0.0
        %1396 = vmatprep.subr.mxu0 0.0
        %1397 = vmatpush1.xpose.msra.mxu0 0.0
        %1398 = vmatprep.subr.mxu0 0.0
        %1399 = vmatpush1.xpose.msra.mxu0 0.0
        %1400 = vmatprep.subr.mxu0 0.0
        %1401 = vmatpush1.xpose.msra.mxu0 0.0
        %1402 = vmatprep.subr.mxu0 0.0
        %1403 = vmatpush1.xpose.msra.mxu0 0.0
        %1404 = vmatprep.subr.mxu0 0.0
        %1405 = vmatpush1.xpose.msra.mxu0 0.0
        %1406 = vmatprep.subr.mxu0 0.0
        %1407 = vmatpush1.xpose.msra.mxu0 0.0
        %1408 = vmatprep.subr.mxu0 0.0
        %1409 = vmatpush1.xpose.msra.mxu0 0.0
        %1410 = vmatprep.subr.mxu0 0.0
        %1411 = vmatpush1.xpose.msra.mxu0 0.0
        %1412 = vmatprep.subr.mxu0 0.0
        %1413 = vmatpush1.xpose.msra.mxu0 0.0
        %1414 = vmatprep.subr.mxu0 0.0
        %1415 = vmatpush1.xpose.msra.mxu0 0.0
        %1416 = vmatprep.subr.mxu0 0.0
        %1417 = vmatpush1.xpose.msra.mxu0 0.0
        %1418 = vmatprep.subr.mxu0 0.0
        %1419 = vmatpush1.xpose.msra.mxu0 0.0
        %1420 = vmatprep.subr.mxu0 0.0
        %1421 = vmatpush1.xpose.msra.mxu0 0.0
        %1422 = vmatprep.subr.mxu0 0.0
        %1423 = vmatpush1.xpose.msra.mxu0 0.0
        %1424 = vmatprep.subr.mxu0 0.0
        %1425 = vmatpush1.xpose.msra.mxu0 0.0
        %1426 = vmatprep.subr.mxu0 0.0
        %1427 = vmatpush1.xpose.msra.mxu0 0.0
        %1428 = vmatprep.subr.mxu0 0.0
        %1429 = vmatpush1.xpose.msra.mxu0 0.0
        %1430 = vmatprep.subr.mxu0 0.0
        %1431 = vmatpush1.xpose.msra.mxu0 0.0
        %1432 = vmatprep.subr.mxu0 0.0
        %1433 = vmatpush1.xpose.msra.mxu0 0.0
        %1434 = vmatprep.subr.mxu0 0.0
        %1435 = vmatpush1.xpose.msra.mxu0 0.0
        %1436 = vmatprep.subr.mxu0 0.0
        %1437 = vmatpush1.xpose.msra.mxu0 0.0
        %1438 = vmatprep.subr.mxu0 0.0
        %1439 = vmatpush1.xpose.msra.mxu0 0.0
        %1440 = vmatprep.subr.mxu0 0.0
        %1441 = vmatpush1.xpose.msra.mxu0 0.0
        %1442 = vmatprep.subr.mxu0 0.0
        %1443 = vmatpush1.xpose.msra.mxu0 0.0
        %1444 = vmatprep.subr.mxu0 0.0
        %1445 = vmatpush1.xpose.msra.mxu0 0.0
        %1446 = vmatprep.subr.mxu0 0.0
        %1447 = vmatpush1.xpose.msra.mxu0 0.0
        %1448 = vmatprep.subr.mxu0 0.0
        %1449 = vmatpush1.xpose.msra.mxu0 0.0
        %1450 = vmatprep.subr.mxu0 0.0
        %1451 = vmatpush1.xpose.msra.mxu0 0.0
        %1452 = vmatprep.subr.mxu0 0.0
        %1453 = vmatpush1.xpose.msra.mxu0 0.0
        %1454 = vmatprep.mubr.f32.mxu0 0.0
        %1455 = vmatmul.mubr.f32.gmra.mrb[0].mxu0 %v1384
        %v1456 = vpop.f32.mrb[0].mxu0
        %v1457 = vadd.f32 0.0, %v1456
        %v1458 = vpop.f32.mrb[0].mxu0
        %1459 = vdwg.mxu0
        %v1460 = vmul.f32 %v1457, 0.17677669
        %v1461 = vadd.f32 %v1460, %v960
        %v1462 = vsel %vm963, %v1461, -inf
        %1463 = vmax.xlane.f32.xlu0 %v1462
        %v1464 = vpop.xlane.xlu0 %1463
        %v1465 = vsub.f32 %v1461, %v1464
        %v1466 = vmul.f32 %v1465, 1.442695
        %v1467 = vpow.pop %v1466
        %v1468 = vsel %vm963, %v1467, 0.0
        %1469 = vadd.xlane.f32.xlu0 %v1468
        %v1470 = vpop.xlane.xlu0 %1469
        %v1471 = vrcp.pop %v1470
        %v1472 = vmul.f32 %v1467, %v1471
        %1473 = vrot.lane.b32.xlu0 %v873, 64
        %v1474 = vpop.permute.xlu0 %1473
        %1475 = vrot.lane.b32.xlu0 %v874, 64
        %v1476 = vpop.permute.xlu0 %1475
        %v1480 = vsel %vm963, %v1472, 0
        %1482 = vmatprep.subr.mxu0 0.0
        %1483 = vmatpush1.msra.mxu0 %v1474
        %1484 = vmatprep.subr.mxu0 0.0
        %1485 = vmatpush1.msra.mxu0 %v1476
        %1486 = vmatprep.subr.mxu0 0.0
        %1487 = vmatpush1.msra.mxu0 0.0
        %1488 = vmatprep.subr.mxu0 0.0
        %1489 = vmatpush1.msra.mxu0 0.0
        %1490 = vmatprep.subr.mxu0 0.0
        %1491 = vmatpush1.msra.mxu0 0.0
        %1492 = vmatprep.subr.mxu0 0.0
        %1493 = vmatpush1.msra.mxu0 0.0
        %1494 = vmatprep.subr.mxu0 0.0
        %1495 = vmatpush1.msra.mxu0 0.0
        %1496 = vmatprep.subr.mxu0 0.0
        %1497 = vmatpush1.msra.mxu0 0.0
        %1498 = vmatprep.subr.mxu0 0.0
        %1499 = vmatpush1.msra.mxu0 0.0
        %1500 = vmatprep.subr.mxu0 0.0
        %1501 = vmatpush1.msra.mxu0 0.0
        %1502 = vmatprep.subr.mxu0 0.0
        %1503 = vmatpush1.msra.mxu0 0.0
        %1504 = vmatprep.subr.mxu0 0.0
        %1505 = vmatpush1.msra.mxu0 0.0
        %1506 = vmatprep.subr.mxu0 0.0
        %1507 = vmatpush1.msra.mxu0 0.0
        %1508 = vmatprep.subr.mxu0 0.0
        %1509 = vmatpush1.msra.mxu0 0.0
        %1510 = vmatprep.subr.mxu0 0.0
        %1511 = vmatpush1.msra.mxu0 0.0
        %1512 = vmatprep.subr.mxu0 0.0
        %1513 = vmatpush1.msra.mxu0 0.0
        %1514 = vmatprep.subr.mxu0 0.0
        %1515 = vmatpush1.msra.mxu0 0.0
        %1516 = vmatprep.subr.mxu0 0.0
        %1517 = vmatpush1.msra.mxu0 0.0
        %1518 = vmatprep.subr.mxu0 0.0
        %1519 = vmatpush1.msra.mxu0 0.0
        %1520 = vmatprep.subr.mxu0 0.0
        %1521 = vmatpush1.msra.mxu0 0.0
        %1522 = vmatprep.subr.mxu0 0.0
        %1523 = vmatpush1.msra.mxu0 0.0
        %1524 = vmatprep.subr.mxu0 0.0
        %1525 = vmatpush1.msra.mxu0 0.0
        %1526 = vmatprep.subr.mxu0 0.0
        %1527 = vmatpush1.msra.mxu0 0.0
        %1528 = vmatprep.subr.mxu0 0.0
        %1529 = vmatpush1.msra.mxu0 0.0
        %1530 = vmatprep.subr.mxu0 0.0
        %1531 = vmatpush1.msra.mxu0 0.0
        %1532 = vmatprep.subr.mxu0 0.0
        %1533 = vmatpush1.msra.mxu0 0.0
        %1534 = vmatprep.subr.mxu0 0.0
        %1535 = vmatpush1.msra.mxu0 0.0
        %1536 = vmatprep.subr.mxu0 0.0
        %1537 = vmatpush1.msra.mxu0 0.0
        %1538 = vmatprep.subr.mxu0 0.0
        %1539 = vmatpush1.msra.mxu0 0.0
        %1540 = vmatprep.subr.mxu0 0.0
        %1541 = vmatpush1.msra.mxu0 0.0
        %1542 = vmatprep.subr.mxu0 0.0
        %1543 = vmatpush1.msra.mxu0 0.0
        %1544 = vmatprep.subr.mxu0 0.0
        %1545 = vmatpush1.msra.mxu0 0.0
        %1546 = vmatprep.mubr.f32.mxu0 0.0
        %1547 = vmatmul.mubr.f32.gmra.mrb[0].mxu0 %v1480
        %v1548 = vpop.f32.mrb[0].mxu0
        %v1549 = vadd.f32 0.0, %v1548
        %v1550 = vpop.f32.mrb[0].mxu0
        %1551 = vdwg.mxu0
        %v1552 = vld [vmem:[#allocation9 + $0x40] sm:$0xff]
        %v1553 = vld [vmem:[#allocation9 + $0x48] sm:$0xff]
        %v1554 = vld [vmem:[#allocation9 + $0x50] sm:$0xff]
        %v1555 = vld [vmem:[#allocation9 + $0x58] sm:$0xff]
        %v1557 = vsel %vm875, %v1549, 0
        %1559 = vmatprep.subr.mxu0 0.0
        %1560 = vmatpush1.msra.mxu0 %v1552
        %1561 = vmatprep.subr.mxu0 0.0
        %1562 = vmatpush1.msra.mxu0 %v1553
        %1563 = vmatprep.subr.mxu0 0.0
        %1564 = vmatpush1.msra.mxu0 %v1554
        %1565 = vmatprep.subr.mxu0 0.0
        %1566 = vmatpush1.msra.mxu0 %v1555
        %1567 = vmatprep.subr.mxu0 0.0
        %1568 = vmatpush1.msra.mxu0 0.0
        %1569 = vmatprep.subr.mxu0 0.0
        %1570 = vmatpush1.msra.mxu0 0.0
        %1571 = vmatprep.subr.mxu0 0.0
        %1572 = vmatpush1.msra.mxu0 0.0
        %1573 = vmatprep.subr.mxu0 0.0
        %1574 = vmatpush1.msra.mxu0 0.0
        %1575 = vmatprep.subr.mxu0 0.0
        %1576 = vmatpush1.msra.mxu0 0.0
        %1577 = vmatprep.subr.mxu0 0.0
        %1578 = vmatpush1.msra.mxu0 0.0
        %1579 = vmatprep.subr.mxu0 0.0
        %1580 = vmatpush1.msra.mxu0 0.0
        %1581 = vmatprep.subr.mxu0 0.0
        %1582 = vmatpush1.msra.mxu0 0.0
        %1583 = vmatprep.subr.mxu0 0.0
        %1584 = vmatpush1.msra.mxu0 0.0
        %1585 = vmatprep.subr.mxu0 0.0
        %1586 = vmatpush1.msra.mxu0 0.0
        %1587 = vmatprep.subr.mxu0 0.0
        %1588 = vmatpush1.msra.mxu0 0.0
        %1589 = vmatprep.subr.mxu0 0.0
        %1590 = vmatpush1.msra.mxu0 0.0
        %1591 = vmatprep.subr.mxu0 0.0
        %1592 = vmatpush1.msra.mxu0 0.0
        %1593 = vmatprep.subr.mxu0 0.0
        %1594 = vmatpush1.msra.mxu0 0.0
        %1595 = vmatprep.subr.mxu0 0.0
        %1596 = vmatpush1.msra.mxu0 0.0
        %1597 = vmatprep.subr.mxu0 0.0
        %1598 = vmatpush1.msra.mxu0 0.0
        %1599 = vmatprep.subr.mxu0 0.0
        %1600 = vmatpush1.msra.mxu0 0.0
        %1601 = vmatprep.subr.mxu0 0.0
        %1602 = vmatpush1.msra.mxu0 0.0
        %1603 = vmatprep.subr.mxu0 0.0
        %1604 = vmatpush1.msra.mxu0 0.0
        %1605 = vmatprep.subr.mxu0 0.0
        %1606 = vmatpush1.msra.mxu0 0.0
        %1607 = vmatprep.subr.mxu0 0.0
        %1608 = vmatpush1.msra.mxu0 0.0
        %1609 = vmatprep.subr.mxu0 0.0
        %1610 = vmatpush1.msra.mxu0 0.0
        %1611 = vmatprep.subr.mxu0 0.0
        %1612 = vmatpush1.msra.mxu0 0.0
        %1613 = vmatprep.subr.mxu0 0.0
        %1614 = vmatpush1.msra.mxu0 0.0
        %1615 = vmatprep.subr.mxu0 0.0
        %1616 = vmatpush1.msra.mxu0 0.0
        %1617 = vmatprep.subr.mxu0 0.0
        %1618 = vmatpush1.msra.mxu0 0.0
        %1619 = vmatprep.subr.mxu0 0.0
        %1620 = vmatpush1.msra.mxu0 0.0
        %1621 = vmatprep.subr.mxu0 0.0
        %1622 = vmatpush1.msra.mxu0 0.0
        %1623 = vmatprep.mubr.f32.mxu0 0.0
        %1624 = vmatmul.mubr.f32.gmra.mrb[0].mxu0 %v1557
        %v1625 = vpop.f32.mrb[0].mxu0
        %v1626 = vadd.f32 0.0, %v1625
        %v1627 = vpop.f32.mrb[0].mxu0
        %1628 = vdwg.mxu0
        %v1629 = vadd.f32 %v1375, %v1626
        %1630 = vrot.lane.b32.xlu0 %v868, 32
        %v1631 = vpop.permute.xlu0 %1630
        %1632 = vrot.lane.b32.xlu0 %v871, 32
        %v1633 = vpop.permute.xlu0 %1632
        %1634 = vrot.lane.b32.xlu0 %v872, 32
        %v1635 = vpop.permute.xlu0 %1634
        %v1636 = vsel %vm875, %v1631, 0
        %v1638 = vsel %vm875, %v1633, 0
        %v1640 = vsel %vm875, %v1635, 0
        %1642 = vmatprep.subr.mxu0 0.0
        %1643 = vmatpush1.xpose.msra.mxu0 %v1638
        %1644 = vmatprep.subr.mxu0 0.0
        %1645 = vmatpush1.xpose.msra.mxu0 %v1640
        %1646 = vmatprep.subr.mxu0 0.0
        %1647 = vmatpush1.xpose.msra.mxu0 0.0
        %1648 = vmatprep.subr.mxu0 0.0
        %1649 = vmatpush1.xpose.msra.mxu0 0.0
        %1650 = vmatprep.subr.mxu0 0.0
        %1651 = vmatpush1.xpose.msra.mxu0 0.0
        %1652 = vmatprep.subr.mxu0 0.0
        %1653 = vmatpush1.xpose.msra.mxu0 0.0
        %1654 = vmatprep.subr.mxu0 0.0
        %1655 = vmatpush1.xpose.msra.mxu0 0.0
        %1656 = vmatprep.subr.mxu0 0.0
        %1657 = vmatpush1.xpose.msra.mxu0 0.0
        %1658 = vmatprep.subr.mxu0 0.0
        %1659 = vmatpush1.xpose.msra.mxu0 0.0
        %1660 = vmatprep.subr.mxu0 0.0
        %1661 = vmatpush1.xpose.msra.mxu0 0.0
        %1662 = vmatprep.subr.mxu0 0.0
        %1663 = vmatpush1.xpose.msra.mxu0 0.0
        %1664 = vmatprep.subr.mxu0 0.0
        %1665 = vmatpush1.xpose.msra.mxu0 0.0
        %1666 = vmatprep.subr.mxu0 0.0
        %1667 = vmatpush1.xpose.msra.mxu0 0.0
        %1668 = vmatprep.subr.mxu0 0.0
        %1669 = vmatpush1.xpose.msra.mxu0 0.0
        %1670 = vmatprep.subr.mxu0 0.0
        %1671 = vmatpush1.xpose.msra.mxu0 0.0
        %1672 = vmatprep.subr.mxu0 0.0
        %1673 = vmatpush1.xpose.msra.mxu0 0.0
        %1674 = vmatprep.subr.mxu0 0.0
        %1675 = vmatpush1.xpose.msra.mxu0 0.0
        %1676 = vmatprep.subr.mxu0 0.0
        %1677 = vmatpush1.xpose.msra.mxu0 0.0
        %1678 = vmatprep.subr.mxu0 0.0
        %1679 = vmatpush1.xpose.msra.mxu0 0.0
        %1680 = vmatprep.subr.mxu0 0.0
        %1681 = vmatpush1.xpose.msra.mxu0 0.0
        %1682 = vmatprep.subr.mxu0 0.0
        %1683 = vmatpush1.xpose.msra.mxu0 0.0
        %1684 = vmatprep.subr.mxu0 0.0
        %1685 = vmatpush1.xpose.msra.mxu0 0.0
        %1686 = vmatprep.subr.mxu0 0.0
        %1687 = vmatpush1.xpose.msra.mxu0 0.0
        %1688 = vmatprep.subr.mxu0 0.0
        %1689 = vmatpush1.xpose.msra.mxu0 0.0
        %1690 = vmatprep.subr.mxu0 0.0
        %1691 = vmatpush1.xpose.msra.mxu0 0.0
        %1692 = vmatprep.subr.mxu0 0.0
        %1693 = vmatpush1.xpose.msra.mxu0 0.0
        %1694 = vmatprep.subr.mxu0 0.0
        %1695 = vmatpush1.xpose.msra.mxu0 0.0
        %1696 = vmatprep.subr.mxu0 0.0
        %1697 = vmatpush1.xpose.msra.mxu0 0.0
        %1698 = vmatprep.subr.mxu0 0.0
        %1699 = vmatpush1.xpose.msra.mxu0 0.0
        %1700 = vmatprep.subr.mxu0 0.0
        %1701 = vmatpush1.xpose.msra.mxu0 0.0
        %1702 = vmatprep.subr.mxu0 0.0
        %1703 = vmatpush1.xpose.msra.mxu0 0.0
        %1704 = vmatprep.subr.mxu0 0.0
        %1705 = vmatpush1.xpose.msra.mxu0 0.0
        %1706 = vmatprep.mubr.f32.mxu0 0.0
        %1707 = vmatmul.mubr.f32.gmra.mrb[0].mxu0 %v1636
        %v1708 = vpop.f32.mrb[0].mxu0
        %v1709 = vadd.f32 0.0, %v1708
        %v1710 = vpop.f32.mrb[0].mxu0
        %1711 = vdwg.mxu0
        %v1712 = vmul.f32 %v1709, 0.17677669
        %v1713 = vadd.f32 %v1712, %v960
        %v1714 = vsel %vm963, %v1713, -inf
        %1715 = vmax.xlane.f32.xlu0 %v1714
        %v1716 = vpop.xlane.xlu0 %1715
        %v1717 = vsub.f32 %v1713, %v1716
        %v1718 = vmul.f32 %v1717, 1.442695
        %v1719 = vpow.pop %v1718
        %v1720 = vsel %vm963, %v1719, 0.0
        %1721 = vadd.xlane.f32.xlu0 %v1720
        %v1722 = vpop.xlane.xlu0 %1721
        %v1723 = vrcp.pop %v1722
        %v1724 = vmul.f32 %v1719, %v1723
        %1725 = vrot.lane.b32.xlu0 %v873, 32
        %v1726 = vpop.permute.xlu0 %1725
        %1727 = vrot.lane.b32.xlu0 %v874, 32
        %v1728 = vpop.permute.xlu0 %1727
        %v1732 = vsel %vm963, %v1724, 0
        %1734 = vmatprep.subr.mxu0 0.0
        %1735 = vmatpush1.msra.mxu0 %v1726
        %1736 = vmatprep.subr.mxu0 0.0
        %1737 = vmatpush1.msra.mxu0 %v1728
        %1738 = vmatprep.subr.mxu0 0.0
        %1739 = vmatpush1.msra.mxu0 0.0
        %1740 = vmatprep.subr.mxu0 0.0
        %1741 = vmatpush1.msra.mxu0 0.0
        %1742 = vmatprep.subr.mxu0 0.0
        %1743 = vmatpush1.msra.mxu0 0.0
        %1744 = vmatprep.subr.mxu0 0.0
        %1745 = vmatpush1.msra.mxu0 0.0
        %1746 = vmatprep.subr.mxu0 0.0
        %1747 = vmatpush1.msra.mxu0 0.0
        %1748 = vmatprep.subr.mxu0 0.0
        %1749 = vmatpush1.msra.mxu0 0.0
        %1750 = vmatprep.subr.mxu0 0.0
        %1751 = vmatpush1.msra.mxu0 0.0
        %1752 = vmatprep.subr.mxu0 0.0
        %1753 = vmatpush1.msra.mxu0 0.0
        %1754 = vmatprep.subr.mxu0 0.0
        %1755 = vmatpush1.msra.mxu0 0.0
        %1756 = vmatprep.subr.mxu0 0.0
        %1757 = vmatpush1.msra.mxu0 0.0
        %1758 = vmatprep.subr.mxu0 0.0
        %1759 = vmatpush1.msra.mxu0 0.0
        %1760 = vmatprep.subr.mxu0 0.0
        %1761 = vmatpush1.msra.mxu0 0.0
        %1762 = vmatprep.subr.mxu0 0.0
        %1763 = vmatpush1.msra.mxu0 0.0
        %1764 = vmatprep.subr.mxu0 0.0
        %1765 = vmatpush1.msra.mxu0 0.0
        %1766 = vmatprep.subr.mxu0 0.0
        %1767 = vmatpush1.msra.mxu0 0.0
        %1768 = vmatprep.subr.mxu0 0.0
        %1769 = vmatpush1.msra.mxu0 0.0
        %1770 = vmatprep.subr.mxu0 0.0
        %1771 = vmatpush1.msra.mxu0 0.0
        %1772 = vmatprep.subr.mxu0 0.0
        %1773 = vmatpush1.msra.mxu0 0.0
        %1774 = vmatprep.subr.mxu0 0.0
        %1775 = vmatpush1.msra.mxu0 0.0
        %1776 = vmatprep.subr.mxu0 0.0
        %1777 = vmatpush1.msra.mxu0 0.0
        %1778 = vmatprep.subr.mxu0 0.0
        %1779 = vmatpush1.msra.mxu0 0.0
        %1780 = vmatprep.subr.mxu0 0.0
        %1781 = vmatpush1.msra.mxu0 0.0
        %1782 = vmatprep.subr.mxu0 0.0
        %1783 = vmatpush1.msra.mxu0 0.0
        %1784 = vmatprep.subr.mxu0 0.0
        %1785 = vmatpush1.msra.mxu0 0.0
        %1786 = vmatprep.subr.mxu0 0.0
        %1787 = vmatpush1.msra.mxu0 0.0
        %1788 = vmatprep.subr.mxu0 0.0
        %1789 = vmatpush1.msra.mxu0 0.0
        %1790 = vmatprep.subr.mxu0 0.0
        %1791 = vmatpush1.msra.mxu0 0.0
        %1792 = vmatprep.subr.mxu0 0.0
        %1793 = vmatpush1.msra.mxu0 0.0
        %1794 = vmatprep.subr.mxu0 0.0
        %1795 = vmatpush1.msra.mxu0 0.0
        %1796 = vmatprep.subr.mxu0 0.0
        %1797 = vmatpush1.msra.mxu0 0.0
        %1798 = vmatprep.mubr.f32.mxu0 0.0
        %1799 = vmatmul.mubr.f32.gmra.mrb[0].mxu0 %v1732
        %v1800 = vpop.f32.mrb[0].mxu0
        %v1801 = vadd.f32 0.0, %v1800
        %v1802 = vpop.f32.mrb[0].mxu0
        %1803 = vdwg.mxu0
        %v1804 = vld [vmem:[#allocation9 + $0x60] sm:$0xff]
        %v1805 = vld [vmem:[#allocation9 + $0x68] sm:$0xff]
        %v1806 = vld [vmem:[#allocation9 + $0x70] sm:$0xff]
        %v1807 = vld [vmem:[#allocation9 + $0x78] sm:$0xff]
        %v1809 = vsel %vm875, %v1801, 0
        %1811 = vmatprep.subr.mxu0 0.0
        %1812 = vmatpush1.msra.mxu0 %v1804
        %1813 = vmatprep.subr.mxu0 0.0
        %1814 = vmatpush1.msra.mxu0 %v1805
        %1815 = vmatprep.subr.mxu0 0.0
        %1816 = vmatpush1.msra.mxu0 %v1806
        %1817 = vmatprep.subr.mxu0 0.0
        %1818 = vmatpush1.msra.mxu0 %v1807
        %1819 = vmatprep.subr.mxu0 0.0
        %1820 = vmatpush1.msra.mxu0 0.0
        %1821 = vmatprep.subr.mxu0 0.0
        %1822 = vmatpush1.msra.mxu0 0.0
        %1823 = vmatprep.subr.mxu0 0.0
        %1824 = vmatpush1.msra.mxu0 0.0
        %1825 = vmatprep.subr.mxu0 0.0
        %1826 = vmatpush1.msra.mxu0 0.0
        %1827 = vmatprep.subr.mxu0 0.0
        %1828 = vmatpush1.msra.mxu0 0.0
        %1829 = vmatprep.subr.mxu0 0.0
        %1830 = vmatpush1.msra.mxu0 0.0
        %1831 = vmatprep.subr.mxu0 0.0
        %1832 = vmatpush1.msra.mxu0 0.0
        %1833 = vmatprep.subr.mxu0 0.0
        %1834 = vmatpush1.msra.mxu0 0.0
        %1835 = vmatprep.subr.mxu0 0.0
        %1836 = vmatpush1.msra.mxu0 0.0
        %1837 = vmatprep.subr.mxu0 0.0
        %1838 = vmatpush1.msra.mxu0 0.0
        %1839 = vmatprep.subr.mxu0 0.0
        %1840 = vmatpush1.msra.mxu0 0.0
        %1841 = vmatprep.subr.mxu0 0.0
        %1842 = vmatpush1.msra.mxu0 0.0
        %1843 = vmatprep.subr.mxu0 0.0
        %1844 = vmatpush1.msra.mxu0 0.0
        %1845 = vmatprep.subr.mxu0 0.0
        %1846 = vmatpush1.msra.mxu0 0.0
        %1847 = vmatprep.subr.mxu0 0.0
        %1848 = vmatpush1.msra.mxu0 0.0
        %1849 = vmatprep.subr.mxu0 0.0
        %1850 = vmatpush1.msra.mxu0 0.0
        %1851 = vmatprep.subr.mxu0 0.0
        %1852 = vmatpush1.msra.mxu0 0.0
        %1853 = vmatprep.subr.mxu0 0.0
        %1854 = vmatpush1.msra.mxu0 0.0
        %1855 = vmatprep.subr.mxu0 0.0
        %1856 = vmatpush1.msra.mxu0 0.0
        %1857 = vmatprep.subr.mxu0 0.0
        %1858 = vmatpush1.msra.mxu0 0.0
        %1859 = vmatprep.subr.mxu0 0.0
        %1860 = vmatpush1.msra.mxu0 0.0
        %1861 = vmatprep.subr.mxu0 0.0
        %1862 = vmatpush1.msra.mxu0 0.0
        %1863 = vmatprep.subr.mxu0 0.0
        %1864 = vmatpush1.msra.mxu0 0.0
        %1865 = vmatprep.subr.mxu0 0.0
        %1866 = vmatpush1.msra.mxu0 0.0
        %1867 = vmatprep.subr.mxu0 0.0
        %1868 = vmatpush1.msra.mxu0 0.0
        %1869 = vmatprep.subr.mxu0 0.0
        %1870 = vmatpush1.msra.mxu0 0.0
        %1871 = vmatprep.subr.mxu0 0.0
        %1872 = vmatpush1.msra.mxu0 0.0
        %1873 = vmatprep.subr.mxu0 0.0
        %1874 = vmatpush1.msra.mxu0 0.0
        %1875 = vmatprep.mubr.f32.mxu0 0.0
        %1876 = vmatmul.mubr.f32.gmra.mrb[0].mxu0 %v1809
        %v1877 = vpop.f32.mrb[0].mxu0
        %v1878 = vadd.f32 0.0, %v1877
        %v1879 = vpop.f32.mrb[0].mxu0
        %1880 = vdwg.mxu0
        %v1881 = vadd.f32 %v1629, %v1878
        %v1882 = vld [vmem:[%s7] sm:$0x1]
        %v1884 = vlaneseq
        %v1885 = vshrl.u32 %v1884, 7
        %v1886 = vsub.s32 0, %v1885
        %v1887 = vrot.slane %v1882, %v1886
        %v1889 = vadd.f32 %v1881, %v1887
        %v1890 = vadd.f32 %v1889, %v774
        %v1891 = vld [vmem:[%s8] sm:$0x1]
        %v1892 = vld [vmem:[%s9] sm:$0x1]
        %1893 = vadd.xlane.f32.xlu0 %v1890
        %v1894 = vpop.xlane.xlu0 %1893
        %v1895 = vrcp.pop 128.0
        %v1896 = vmul.f32 %v1894, %v1895
        %v1897 = vsub.f32 %v1890, %v1896
        %v1898 = vmul.f32 %v1897, %v1897
        %1899 = vadd.xlane.f32.xlu0 %v1898
        %v1900 = vpop.xlane.xlu0 %1899
        %v1901 = vmul.f32 %v1900, %v1895
        %v1902 = vadd.f32 %v1901, 1e-12
        %v1903 = vrsqrt.pop %v1902
        %v1904 = vmul.f32 %v1897, %v1903
        %v1906 = vlaneseq
        %v1907 = vshrl.u32 %v1906, 7
        %v1908 = vsub.s32 0, %v1907
        %v1909 = vrot.slane %v1891, %v1908
        %v1911 = vmul.f32 %v1909, %v1904
        %v1913 = vlaneseq
        %v1914 = vshrl.u32 %v1913, 7
        %v1915 = vsub.s32 0, %v1914
        %v1916 = vrot.slane %v1892, %v1915
        %v1918 = vadd.f32 %v1911, %v1916
        %v1919 = vld [vmem:[#allocation11] sm:$0xff]
        %v1920 = vld [vmem:[#allocation11 + $0x10] sm:$0xff]
        %v1921 = vld [vmem:[#allocation11 + $0x20] sm:$0xff]
        %v1922 = vld [vmem:[#allocation11 + $0x30] sm:$0xff]
        %v1923 = vld [vmem:[#allocation11 + $0x40] sm:$0xff]
        %v1924 = vld [vmem:[#allocation11 + $0x50] sm:$0xff]
        %v1925 = vld [vmem:[#allocation11 + $0x60] sm:$0xff]
        %v1926 = vld [vmem:[#allocation11 + $0x70] sm:$0xff]
        %v1927 = vld [vmem:[#allocation11 + $0x80] sm:$0xff]
        %v1928 = vld [vmem:[#allocation11 + $0x90] sm:$0xff]
        %v1929 = vld [vmem:[#allocation11 + $0xa0] sm:$0xff]
        %v1930 = vld [vmem:[#allocation11 + $0xb0] sm:$0xff]
        %v1931 = vld [vmem:[#allocation11 + $0xc0] sm:$0xff]
        %v1932 = vld [vmem:[#allocation11 + $0xd0] sm:$0xff]
        %v1933 = vld [vmem:[#allocation11 + $0xe0] sm:$0xff]
        %v1934 = vld [vmem:[#allocation11 + $0xf0] sm:$0xff]
        %v1935 = vld [vmem:[%s11] sm:$0x1]
        %v1937 = vlaneseq
        %v1938 = vshrl.u32 %v1937, 7
        %v1939 = vsub.s32 0, %v1938
        %v1940 = vrot.slane %v1935, %v1939
        %1942 = vmatprep.subr.mxu0 0.0
        %1943 = vmatpush1.msra.mxu0 %v1919
        %1944 = vmatprep.subr.mxu0 0.0
        %1945 = vmatpush1.msra.mxu0 %v1920
        %1946 = vmatprep.subr.mxu0 0.0
        %1947 = vmatpush1.msra.mxu0 %v1921
        %1948 = vmatprep.subr.mxu0 0.0
        %1949 = vmatpush1.msra.mxu0 %v1922
        %1950 = vmatprep.subr.mxu0 0.0
        %1951 = vmatpush1.msra.mxu0 %v1923
        %1952 = vmatprep.subr.mxu0 0.0
        %1953 = vmatpush1.msra.mxu0 %v1924
        %1954 = vmatprep.subr.mxu0 0.0
        %1955 = vmatpush1.msra.mxu0 %v1925
        %1956 = vmatprep.subr.mxu0 0.0
        %1957 = vmatpush1.msra.mxu0 %v1926
        %1958 = vmatprep.subr.mxu0 0.0
        %1959 = vmatpush1.msra.mxu0 %v1927
        %1960 = vmatprep.subr.mxu0 0.0
        %1961 = vmatpush1.msra.mxu0 %v1928
        %1962 = vmatprep.subr.mxu0 0.0
        %1963 = vmatpush1.msra.mxu0 %v1929
        %1964 = vmatprep.subr.mxu0 0.0
        %1965 = vmatpush1.msra.mxu0 %v1930
        %1966 = vmatprep.subr.mxu0 0.0
        %1967 = vmatpush1.msra.mxu0 %v1931
        %1968 = vmatprep.subr.mxu0 0.0
        %1969 = vmatpush1.msra.mxu0 %v1932
        %1970 = vmatprep.subr.mxu0 0.0
        %1971 = vmatpush1.msra.mxu0 %v1933
        %1972 = vmatprep.subr.mxu0 0.0
        %1973 = vmatpush1.msra.mxu0 %v1934
        %1974 = vmatprep.subr.mxu0 0.0
        %1975 = vmatpush1.msra.mxu0 0.0
        %1976 = vmatprep.subr.mxu0 0.0
        %1977 = vmatpush1.msra.mxu0 0.0
        %1978 = vmatprep.subr.mxu0 0.0
        %1979 = vmatpush1.msra.mxu0 0.0
        %1980 = vmatprep.subr.mxu0 0.0
        %1981 = vmatpush1.msra.mxu0 0.0
        %1982 = vmatprep.subr.mxu0 0.0
        %1983 = vmatpush1.msra.mxu0 0.0
        %1984 = vmatprep.subr.mxu0 0.0
        %1985 = vmatpush1.msra.mxu0 0.0
        %1986 = vmatprep.subr.mxu0 0.0
        %1987 = vmatpush1.msra.mxu0 0.0
        %1988 = vmatprep.subr.mxu0 0.0
        %1989 = vmatpush1.msra.mxu0 0.0
        %1990 = vmatprep.subr.mxu0 0.0
        %1991 = vmatpush1.msra.mxu0 0.0
        %1992 = vmatprep.subr.mxu0 0.0
        %1993 = vmatpush1.msra.mxu0 0.0
        %1994 = vmatprep.subr.mxu0 0.0
        %1995 = vmatpush1.msra.mxu0 0.0
        %1996 = vmatprep.subr.mxu0 0.0
        %1997 = vmatpush1.msra.mxu0 0.0
        %1998 = vmatprep.subr.mxu0 0.0
        %1999 = vmatpush1.msra.mxu0 0.0
        %2000 = vmatprep.subr.mxu0 0.0
        %2001 = vmatpush1.msra.mxu0 0.0
        %2002 = vmatprep.subr.mxu0 0.0
        %2003 = vmatpush1.msra.mxu0 0.0
        %2004 = vmatprep.subr.mxu0 0.0
        %2005 = vmatpush1.msra.mxu0 0.0
        %2006 = vmatprep.mubr.f32.mxu0 0.0
        %2007 = vmatmul.mubr.f32.gmra.mrb[0].mxu0 %v1918
        %v2008 = vpop.f32.mrb[0].mxu0
        %v2009 = vadd.f32 %v1940, %v2008
        %v2010 = vpop.f32.mrb[0].mxu0
        %2011 = vdwg.mxu0
        %v2012 = vmul.f32 %v2009, 0.5
        %v2013 = vmul.f32 %v2009, 0.70710677
        %v2014 = verf.f32.pop %v2013
        %v2015 = vadd.f32 %v2014, 1.0
        %v2016 = vmul.f32 %v2012, %v2015
        %v2017 = vld [vmem:[#allocation12] sm:$0xff]
        %v2018 = vld [vmem:[#allocation12 + $0x8] sm:$0xff]
        %v2019 = vld [vmem:[#allocation12 + $0x10] sm:$0xff]
        %v2020 = vld [vmem:[#allocation12 + $0x18] sm:$0xff]
        %v2021 = vld [vmem:[#allocation12 + $0x20] sm:$0xff]
        %v2022 = vld [vmem:[#allocation12 + $0x28] sm:$0xff]
        %v2023 = vld [vmem:[#allocation12 + $0x30] sm:$0xff]
        %v2024 = vld [vmem:[#allocation12 + $0x38] sm:$0xff]
        %v2025 = vld [vmem:[#allocation12 + $0x40] sm:$0xff]
        %v2026 = vld [vmem:[#allocation12 + $0x48] sm:$0xff]
        %v2027 = vld [vmem:[#allocation12 + $0x50] sm:$0xff]
        %v2028 = vld [vmem:[#allocation12 + $0x58] sm:$0xff]
        %v2029 = vld [vmem:[#allocation12 + $0x60] sm:$0xff]
        %v2030 = vld [vmem:[#allocation12 + $0x68] sm:$0xff]
        %v2031 = vld [vmem:[#allocation12 + $0x70] sm:$0xff]
        %v2032 = vld [vmem:[#allocation12 + $0x78] sm:$0xff]
        %v2033 = vld [vmem:[#allocation11 + $0x8] sm:$0xff]
        %v2034 = vld [vmem:[#allocation11 + $0x18] sm:$0xff]
        %v2035 = vld [vmem:[#allocation11 + $0x28] sm:$0xff]
        %v2036 = vld [vmem:[#allocation11 + $0x38] sm:$0xff]
        %v2037 = vld [vmem:[#allocation11 + $0x48] sm:$0xff]
        %v2038 = vld [vmem:[#allocation11 + $0x58] sm:$0xff]
        %v2039 = vld [vmem:[#allocation11 + $0x68] sm:$0xff]
        %v2040 = vld [vmem:[#allocation11 + $0x78] sm:$0xff]
        %v2041 = vld [vmem:[#allocation11 + $0x88] sm:$0xff]
        %v2042 = vld [vmem:[#allocation11 + $0x98] sm:$0xff]
        %v2043 = vld [vmem:[#allocation11 + $0xa8] sm:$0xff]
        %v2044 = vld [vmem:[#allocation11 + $0xb8] sm:$0xff]
        %v2045 = vld [vmem:[#allocation11 + $0xc8] sm:$0xff]
        %v2046 = vld [vmem:[#allocation11 + $0xd8] sm:$0xff]
        %v2047 = vld [vmem:[#allocation11 + $0xe8] sm:$0xff]
        %v2048 = vld [vmem:[#allocation11 + $0xf8] sm:$0xff]
        %v2049 = vld [vmem:[%s11 + $0x1] sm:$0x1]
        %v2051 = vlaneseq
        %v2052 = vshrl.u32 %v2051, 7
        %v2053 = vsub.s32 0, %v2052
        %v2054 = vrot.slane %v2049, %v2053
        %2056 = vmatprep.subr.mxu0 0.0
        %2057 = vmatpush1.msra.mxu0 %v2033
        %2058 = vmatprep.subr.mxu0 0.0
        %2059 = vmatpush1.msra.mxu0 %v2034
        %2060 = vmatprep.subr.mxu0 0.0
        %2061 = vmatpush1.msra.mxu0 %v2035
        %2062 = vmatprep.subr.mxu0 0.0
        %2063 = vmatpush1.msra.mxu0 %v2036
        %2064 = vmatprep.subr.mxu0 0.0
        %2065 = vmatpush1.msra.mxu0 %v2037
        %2066 = vmatprep.subr.mxu0 0.0
        %2067 = vmatpush1.msra.mxu0 %v2038
        %2068 = vmatprep.subr.mxu0 0.0
        %2069 = vmatpush1.msra.mxu0 %v2039
        %2070 = vmatprep.subr.mxu0 0.0
        %2071 = vmatpush1.msra.mxu0 %v2040
        %2072 = vmatprep.subr.mxu0 0.0
        %2073 = vmatpush1.msra.mxu0 %v2041
        %2074 = vmatprep.subr.mxu0 0.0
        %2075 = vmatpush1.msra.mxu0 %v2042
        %2076 = vmatprep.subr.mxu0 0.0
        %2077 = vmatpush1.msra.mxu0 %v2043
        %2078 = vmatprep.subr.mxu0 0.0
        %2079 = vmatpush1.msra.mxu0 %v2044
        %2080 = vmatprep.subr.mxu0 0.0
        %2081 = vmatpush1.msra.mxu0 %v2045
        %2082 = vmatprep.subr.mxu0 0.0
        %2083 = vmatpush1.msra.mxu0 %v2046
        %2084 = vmatprep.subr.mxu0 0.0
        %2085 = vmatpush1.msra.mxu0 %v2047
        %2086 = vmatprep.subr.mxu0 0.0
        %2087 = vmatpush1.msra.mxu0 %v2048
        %2088 = vmatprep.subr.mxu0 0.0
        %2089 = vmatpush1.msra.mxu0 0.0
        %2090 = vmatprep.subr.mxu0 0.0
        %2091 = vmatpush1.msra.mxu0 0.0
        %2092 = vmatprep.subr.mxu0 0.0
        %2093 = vmatpush1.msra.mxu0 0.0
        %2094 = vmatprep.subr.mxu0 0.0
        %2095 = vmatpush1.msra.mxu0 0.0
        %2096 = vmatprep.subr.mxu0 0.0
        %2097 = vmatpush1.msra.mxu0 0.0
        %2098 = vmatprep.subr.mxu0 0.0
        %2099 = vmatpush1.msra.mxu0 0.0
        %2100 = vmatprep.subr.mxu0 0.0
        %2101 = vmatpush1.msra.mxu0 0.0
        %2102 = vmatprep.subr.mxu0 0.0
        %2103 = vmatpush1.msra.mxu0 0.0
        %2104 = vmatprep.subr.mxu0 0.0
        %2105 = vmatpush1.msra.mxu0 0.0
        %2106 = vmatprep.subr.mxu0 0.0
        %2107 = vmatpush1.msra.mxu0 0.0
        %2108 = vmatprep.subr.mxu0 0.0
        %2109 = vmatpush1.msra.mxu0 0.0
        %2110 = vmatprep.subr.mxu0 0.0
        %2111 = vmatpush1.msra.mxu0 0.0
        %2112 = vmatprep.subr.mxu0 0.0
        %2113 = vmatpush1.msra.mxu0 0.0
        %2114 = vmatprep.subr.mxu0 0.0
        %2115 = vmatpush1.msra.mxu0 0.0
        %2116 = vmatprep.subr.mxu0 0.0
        %2117 = vmatpush1.msra.mxu0 0.0
        %2118 = vmatprep.subr.mxu0 0.0
        %2119 = vmatpush1.msra.mxu0 0.0
        %2120 = vmatprep.mubr.f32.mxu0 0.0
        %2121 = vmatmul.mubr.f32.gmra.mrb[0].mxu0 %v1918
        %v2122 = vpop.f32.mrb[0].mxu0
        %v2123 = vadd.f32 %v2054, %v2122
        %v2124 = vpop.f32.mrb[0].mxu0
        %2125 = vdwg.mxu0
        %v2126 = vmul.f32 %v2123, 0.5
        %v2127 = vmul.f32 %v2123, 0.70710677
        %v2128 = verf.f32.pop %v2127
        %v2129 = vadd.f32 %v2128, 1.0
        %v2130 = vmul.f32 %v2126, %v2129
        %v2131 = vld [vmem:[#allocation12 + $0x80] sm:$0xff]
        %v2132 = vld [vmem:[#allocation12 + $0x88] sm:$0xff]
        %v2133 = vld [vmem:[#allocation12 + $0x90] sm:$0xff]
        %v2134 = vld [vmem:[#allocation12 + $0x98] sm:$0xff]
        %v2135 = vld [vmem:[#allocation12 + $0xa0] sm:$0xff]
        %v2136 = vld [vmem:[#allocation12 + $0xa8] sm:$0xff]
        %v2137 = vld [vmem:[#allocation12 + $0xb0] sm:$0xff]
        %v2138 = vld [vmem:[#allocation12 + $0xb8] sm:$0xff]
        %v2139 = vld [vmem:[#allocation12 + $0xc0] sm:$0xff]
        %v2140 = vld [vmem:[#allocation12 + $0xc8] sm:$0xff]
        %v2141 = vld [vmem:[#allocation12 + $0xd0] sm:$0xff]
        %v2142 = vld [vmem:[#allocation12 + $0xd8] sm:$0xff]
        %v2143 = vld [vmem:[#allocation12 + $0xe0] sm:$0xff]
        %v2144 = vld [vmem:[#allocation12 + $0xe8] sm:$0xff]
        %v2145 = vld [vmem:[#allocation12 + $0xf0] sm:$0xff]
        %v2146 = vld [vmem:[#allocation12 + $0xf8] sm:$0xff]
        %2147 = vmatprep.subr.mxu0 0.0
        %2148 = vmatpush1.msra.mxu0 %v2131
        %2149 = vmatprep.subr.mxu0 0.0
        %2150 = vmatpush1.msra.mxu0 %v2132
        %2151 = vmatprep.subr.mxu0 0.0
        %2152 = vmatpush1.msra.mxu0 %v2133
        %2153 = vmatprep.subr.mxu0 0.0
        %2154 = vmatpush1.msra.mxu0 %v2134
        %2155 = vmatprep.subr.mxu0 0.0
        %2156 = vmatpush1.msra.mxu0 %v2135
        %2157 = vmatprep.subr.mxu0 0.0
        %2158 = vmatpush1.msra.mxu0 %v2136
        %2159 = vmatprep.subr.mxu0 0.0
        %2160 = vmatpush1.msra.mxu0 %v2137
        %2161 = vmatprep.subr.mxu0 0.0
        %2162 = vmatpush1.msra.mxu0 %v2138
        %2163 = vmatprep.subr.mxu0 0.0
        %2164 = vmatpush1.msra.mxu0 %v2139
        %2165 = vmatprep.subr.mxu0 0.0
        %2166 = vmatpush1.msra.mxu0 %v2140
        %2167 = vmatprep.subr.mxu0 0.0
        %2168 = vmatpush1.msra.mxu0 %v2141
        %2169 = vmatprep.subr.mxu0 0.0
        %2170 = vmatpush1.msra.mxu0 %v2142
        %2171 = vmatprep.subr.mxu0 0.0
        %2172 = vmatpush1.msra.mxu0 %v2143
        %2173 = vmatprep.subr.mxu0 0.0
        %2174 = vmatpush1.msra.mxu0 %v2144
        %2175 = vmatprep.subr.mxu0 0.0
        %2176 = vmatpush1.msra.mxu0 %v2145
        %2177 = vmatprep.subr.mxu0 0.0
        %2178 = vmatpush1.msra.mxu0 %v2146
        %2179 = vmatprep.subr.mxu0 0.0
        %2180 = vmatpush1.msra.mxu0 0.0
        %2181 = vmatprep.subr.mxu0 0.0
        %2182 = vmatpush1.msra.mxu0 0.0
        %2183 = vmatprep.subr.mxu0 0.0
        %2184 = vmatpush1.msra.mxu0 0.0
        %2185 = vmatprep.subr.mxu0 0.0
        %2186 = vmatpush1.msra.mxu0 0.0
        %2187 = vmatprep.subr.mxu0 0.0
        %2188 = vmatpush1.msra.mxu0 0.0
        %2189 = vmatprep.subr.mxu0 0.0
        %2190 = vmatpush1.msra.mxu0 0.0
        %2191 = vmatprep.subr.mxu0 0.0
        %2192 = vmatpush1.msra.mxu0 0.0
        %2193 = vmatprep.subr.mxu0 0.0
        %2194 = vmatpush1.msra.mxu0 0.0
        %2195 = vmatprep.subr.mxu0 0.0
        %2196 = vmatpush1.msra.mxu0 0.0
        %2197 = vmatprep.subr.mxu0 0.0
        %2198 = vmatpush1.msra.mxu0 0.0
        %2199 = vmatprep.subr.mxu0 0.0
        %2200 = vmatpush1.msra.mxu0 0.0
        %2201 = vmatprep.subr.mxu0 0.0
        %2202 = vmatpush1.msra.mxu0 0.0
        %2203 = vmatprep.subr.mxu0 0.0
        %2204 = vmatpush1.msra.mxu0 0.0
        %2205 = vmatprep.subr.mxu0 0.0
        %2206 = vmatpush1.msra.mxu0 0.0
        %2207 = vmatprep.subr.mxu0 0.0
        %2208 = vmatpush1.msra.mxu0 0.0
        %2209 = vmatprep.subr.mxu0 0.0
        %2210 = vmatpush1.msra.mxu0 0.0
        %2211 = vmatprep.mubr.f32.mxu0 0.0
        %2212 = vmatmul.mubr.f32.gmra.mrb[0].mxu0 %v2130
        %v2213 = vpop.f32.mrb[0].mxu0
        %v2214 = vadd.f32 0.0, %v2213
        %v2215 = vpop.f32.mrb[0].mxu0
        %2216 = vdwg.mxu0
        %2217 = vmatprep.subr.mxu0 0.0
        %2218 = vmatpush1.msra.mxu0 %v2017
        %2219 = vmatprep.subr.mxu0 0.0
        %2220 = vmatpush1.msra.mxu0 %v2018
        %2221 = vmatprep.subr.mxu0 0.0
        %2222 = vmatpush1.msra.mxu0 %v2019
        %2223 = vmatprep.subr.mxu0 0.0
        %2224 = vmatpush1.msra.mxu0 %v2020
        %2225 = vmatprep.subr.mxu0 0.0
        %2226 = vmatpush1.msra.mxu0 %v2021
        %2227 = vmatprep.subr.mxu0 0.0
        %2228 = vmatpush1.msra.mxu0 %v2022
        %2229 = vmatprep.subr.mxu0 0.0
        %2230 = vmatpush1.msra.mxu0 %v2023
        %2231 = vmatprep.subr.mxu0 0.0
        %2232 = vmatpush1.msra.mxu0 %v2024
        %2233 = vmatprep.subr.mxu0 0.0
        %2234 = vmatpush1.msra.mxu0 %v2025
        %2235 = vmatprep.subr.mxu0 0.0
        %2236 = vmatpush1.msra.mxu0 %v2026
        %2237 = vmatprep.subr.mxu0 0.0
        %2238 = vmatpush1.msra.mxu0 %v2027
        %2239 = vmatprep.subr.mxu0 0.0
        %2240 = vmatpush1.msra.mxu0 %v2028
        %2241 = vmatprep.subr.mxu0 0.0
        %2242 = vmatpush1.msra.mxu0 %v2029
        %2243 = vmatprep.subr.mxu0 0.0
        %2244 = vmatpush1.msra.mxu0 %v2030
        %2245 = vmatprep.subr.mxu0 0.0
        %2246 = vmatpush1.msra.mxu0 %v2031
        %2247 = vmatprep.subr.mxu0 0.0
        %2248 = vmatpush1.msra.mxu0 %v2032
        %2249 = vmatprep.subr.mxu0 0.0
        %2250 = vmatpush1.msra.mxu0 0.0
        %2251 = vmatprep.subr.mxu0 0.0
        %2252 = vmatpush1.msra.mxu0 0.0
        %2253 = vmatprep.subr.mxu0 0.0
        %2254 = vmatpush1.msra.mxu0 0.0
        %2255 = vmatprep.subr.mxu0 0.0
        %2256 = vmatpush1.msra.mxu0 0.0
        %2257 = vmatprep.subr.mxu0 0.0
        %2258 = vmatpush1.msra.mxu0 0.0
        %2259 = vmatprep.subr.mxu0 0.0
        %2260 = vmatpush1.msra.mxu0 0.0
        %2261 = vmatprep.subr.mxu0 0.0
        %2262 = vmatpush1.msra.mxu0 0.0
        %2263 = vmatprep.subr.mxu0 0.0
        %2264 = vmatpush1.msra.mxu0 0.0
        %2265 = vmatprep.subr.mxu0 0.0
        %2266 = vmatpush1.msra.mxu0 0.0
        %2267 = vmatprep.subr.mxu0 0.0
        %2268 = vmatpush1.msra.mxu0 0.0
        %2269 = vmatprep.subr.mxu0 0.0
        %2270 = vmatpush1.msra.mxu0 0.0
        %2271 = vmatprep.subr.mxu0 0.0
        %2272 = vmatpush1.msra.mxu0 0.0
        %2273 = vmatprep.subr.mxu0 0.0
        %2274 = vmatpush1.msra.mxu0 0.0
        %2275 = vmatprep.subr.mxu0 0.0
        %2276 = vmatpush1.msra.mxu0 0.0
        %2277 = vmatprep.subr.mxu0 0.0
        %2278 = vmatpush1.msra.mxu0 0.0
        %2279 = vmatprep.subr.mxu0 0.0
        %2280 = vmatpush1.msra.mxu0 0.0
        %2281 = vmatprep.mubr.f32.mxu0 0.0
        %2282 = vmatmul.mubr.f32.gmra.mrb[0].mxu0 %v2016
        %v2283 = vpop.f32.mrb[0].mxu0
        %v2284 = vadd.f32 %v2214, %v2283
        %v2285 = vpop.f32.mrb[0].mxu0
        %2286 = vdwg.mxu0
        %v2287 = vld [vmem:[%s13] sm:$0x1]
        %v2289 = vlaneseq
        %v2290 = vshrl.u32 %v2289, 7
        %v2291 = vsub.s32 0, %v2290
        %v2292 = vrot.slane %v2287, %v2291
        %v2294 = vadd.f32 %v2284, %v2292
        %v2295 = vadd.f32 %v2294, %v1918
        %v2296 = vld [vmem:[%s14] sm:$0x1]
        %v2297 = vld [vmem:[%s15] sm:$0x1]
        %2298 = vadd.xlane.f32.xlu0 %v2295
        %v2299 = vpop.xlane.xlu0 %2298
        %v2300 = vmul.f32 %v2299, %v1895
        %v2301 = vsub.f32 %v2295, %v2300
        %v2302 = vmul.f32 %v2301, %v2301
        %2303 = vadd.xlane.f32.xlu0 %v2302
        %v2304 = vpop.xlane.xlu0 %2303
        %v2305 = vmul.f32 %v2304, %v1895
        %v2306 = vadd.f32 %v2305, 1e-12
        %v2307 = vrsqrt.pop %v2306
        %v2308 = vmul.f32 %v2301, %v2307
        %v2310 = vlaneseq
        %v2311 = vshrl.u32 %v2310, 7
        %v2312 = vsub.s32 0, %v2311
        %v2313 = vrot.slane %v2296, %v2312
        %v2315 = vmul.f32 %v2313, %v2308
        %v2317 = vlaneseq
        %v2318 = vshrl.u32 %v2317, 7
        %v2319 = vsub.s32 0, %v2318
        %v2320 = vrot.slane %v2297, %v2319
        %v2322 = vadd.f32 %v2315, %v2320
        %2323 = vst [vmem:[%s637] sm:$0xff] %v2322
        %s2324 = sand.u32 %s404, 1
        %s2325 = scalar_lea.sflag [#allocation5], %s2324
        %s2326 = sand.u32 %s404, 1
        %s2327 = smul.addr %s2326, 8
        %s2328 = scalar_lea.vmem [#allocation14], %s2327
        // Predicated region
        $region113: #{tpu_custom_call.1} parent=83 // pred_check
          %p2329 = pneg %p414
        $region114: #{tpu_custom_call.1} parent=83 // pred_check_branch
          %2331 = sbr.rel (%p2329) target = $region116
        $region115: #{tpu_custom_call.1} parent=83 // pred_region
          %s2333 = ssub.s32 128, 128
          %2334 = vsyncadd %s2325, %s2333
          %s2335 = smul.addr %s40, 2
          %s2336 = sadd.s32 %s41, %s2335
          %s2337 = smul.addr %s2336, 128
          %s2338 = scalar_lea.hbm %s16, %s2337
          %s2340 = sshll.u32 %s2328, 4
          %s2341 = int_to_ptr.vmem [resolvable:$true] %s2340
          %2343 = dma.vmem_to_hbm [thread:$0]  %s2341, 128, %s2338, %s2325
        $region116: #{tpu_custom_call.1} parent=83 // pred_fallthru
          _
      $region84: #{tpu_custom_call.1} parent=5 // pred_fallthru
        _
      %p2344 = scmp.le.s32.totalorder 2, %s31
      // Predicated region
      $region117: #{tpu_custom_call.1} parent=5 // pred_check
        %p2345 = pneg %p2344
      $region118: #{tpu_custom_call.1} parent=5 // pred_check_branch
        %2347 = sbr.rel (%p2345) target = $region120
      $region119: #{tpu_custom_call.1} parent=5 // pred_region
        %s2348 = ssub.s32 %s31, 2
        // Predicated region
        $region121: #{tpu_custom_call.1} parent=119 // pred_check
          %p2349 = pneg %p420
        $region122: #{tpu_custom_call.1} parent=119 // pred_check_branch
          %2351 = sbr.rel (%p2349) target = $region124
        $region123: #{tpu_custom_call.1} parent=119 // pred_region
          %s2352 = sand.u32 %s405, 1
          %s2353 = scalar_lea.sflag [#allocation5], %s2352
          %s2354 = sand.u32 %s405, 1
          %s2355 = smul.addr %s2354, 8
          %s2356 = scalar_lea.vmem [#allocation14], %s2355
          %2357 = dma.done %s2353, 128
        $region124: #{tpu_custom_call.1} parent=119 // pred_fallthru
          _
      $region120: #{tpu_custom_call.1} parent=5 // pred_fallthru
        _
    $region6: #{tpu_custom_call.1} parent=1 // loop_footer
      %s35 = sadd.s32 1, %s31
    $region7: #{tpu_custom_call.1} parent=1 // loop_footer_branch
      %30 = sbr.rel target = $region3
    $region8: #{tpu_custom_call.1} parent=1 // loop_exit
      _
    %2358 = vsyncpa [#allocation4], 1
    %s2359 = scalar_lea.sflag [#allocation4], 1
    %2360 = vsyncpa %s2359, 1
    %2361 = vsyncpa [#allocation7], 1
    %2362 = vsyncpa [#allocation10], 1
    %2363 = vsyncpa [#allocation13], 1
    %2364 = vsyncpa [#allocation5], 1
    %s2365 = scalar_lea.sflag [#allocation5], 1
    %2366 = vsyncpa %s2365, 1

</llo_original>
